<compile_context>
chip_gen: v5e
topology: v5e:2x2
jax: 0.10.0
libtpu: 0.0.40
codegen_flags: <defaults>
</compile_context>

<pallas_src>
import jax
import jax.numpy as jnp
from jax.experimental import pallas as pl
from jax.experimental.pallas import tpu as pltpu

LEAKY_SLOPE = 0.01   # torch.nn.LeakyReLU default
BN_EPS = 1e-5        # torch.nn.BatchNorm1d default


def _leaky(v):
    return jnp.where(v > 0, v, LEAKY_SLOPE * v)


def _shift_right_zero(v):
    """out[:, j] = v[:, j-1], out[:, 0] = 0 (lane roll + boundary mask)."""
    lane = jax.lax.broadcasted_iota(jnp.int32, v.shape, v.ndim - 1)
    return jnp.where(lane == 0, 0.0, pltpu.roll(v, shift=1, axis=v.ndim - 1))


def _shift_left_zero(v):
    """out[:, j] = v[:, j+1], out[:, L-1] = 0 (lane roll + boundary mask)."""
    L = v.shape[-1]
    lane = jax.lax.broadcasted_iota(jnp.int32, v.shape, v.ndim - 1)
    return jnp.where(lane == L - 1, 0.0,
                     pltpu.roll(v, shift=L - 1, axis=v.ndim - 1))


def ublock_main_kernel(x_ref, w1c_ref, w1l_ref, w1r_ref,
                       w2e_ref, w2o_ref, w2l_ref, w2r_ref,
                       wca_ref, wcb_ref, b1_ref, b2_ref, bc_ref,
                       pre_ref, sum_ref, ssq_ref):
    """One batch sample per grid step.  Everything is (channels, length):
      x_ref   : (1, Cin, L)   original (NOT upsampled) input
      pre_ref : (1, 2*Co, L)  pre-BN activations; rows [0:Co]=even positions,
                              rows [Co:2Co]=odd positions of the 2L output
      sum_ref / ssq_ref : (1, Co, 1)  per-channel partial BN statistics
    """
    Co = b1_ref.shape[0]
    f32 = jnp.float32

    x = x_ref[0]                                    # (Cin, L)
    x_m1 = _shift_right_zero(x)                     # x[:, j-1]
    x_p1 = _shift_left_zero(x)                      # x[:, j+1]

    # conv1 on the 2x-upsampled signal == even/odd polyphase conv on x.
    #   even: W1_0 @ x[j-1] + (W1_1+W1_2) @ x[j]
    #   odd : (W1_0+W1_1) @ x[j] + W1_2 @ x[j+1]
    b1 = b1_ref[...]                                # (Co, 1), lane-broadcast
    y1c = jnp.dot(w1c_ref[...], x, preferred_element_type=f32)        # (2Co, L)
    y1e = y1c[:Co] + jnp.dot(w1l_ref[...], x_m1, preferred_element_type=f32) + b1
    y1o = y1c[Co:] + jnp.dot(w1r_ref[...], x_p1, preferred_element_type=f32) + b1
    x1e = _leaky(y1e)                               # (Co, L)
    x1o = _leaky(y1o)

    # conv2 (k=3, p=1) on x1, still in the even/odd domain:
    #   even: W2_0 @ x1_o[j-1] + W2_1 @ x1_e[j] + W2_2 @ x1_o[j]
    #   odd : W2_0 @ x1_e[j]   + W2_1 @ x1_o[j] + W2_2 @ x1_e[j+1]
    b2 = b2_ref[...]
    ze = jnp.dot(w2e_ref[...], x1e, preferred_element_type=f32)       # (2Co, L)
    zo = jnp.dot(w2o_ref[...], x1o, preferred_element_type=f32)       # (2Co, L)
    y2e = (ze[:Co] + zo[:Co]
           + jnp.dot(w2l_ref[...], _shift_right_zero(x1o),
                     preferred_element_type=f32) + b2)
    y2o = (ze[Co:] + zo[Co:]
           + jnp.dot(w2r_ref[...], _shift_left_zero(x1e),
                     preferred_element_type=f32) + b2)
    x2e = _leaky(y2e)
    x2o = _leaky(y2o)

    # choke: 1x1 conv on cat([x1, x2], C) == split matmul (no concat needed)
    bc = bc_ref[...]
    pre_e = _leaky(jnp.dot(wca_ref[...], x1e, preferred_element_type=f32)
                   + jnp.dot(wcb_ref[...], x2e, preferred_element_type=f32) + bc)
    pre_o = _leaky(jnp.dot(wca_ref[...], x1o, preferred_element_type=f32)
                   + jnp.dot(wcb_ref[...], x2o, preferred_element_type=f32) + bc)

    pre_ref[0, 0:Co, :] = pre_e
    pre_ref[0, Co:2 * Co, :] = pre_o

    # per-sample BN partial statistics (summed over both parities / all L)
    sum_ref[0] = (jnp.sum(pre_e, axis=1, keepdims=True)
                  + jnp.sum(pre_o, axis=1, keepdims=True))
    ssq_ref[0] = (jnp.sum(pre_e * pre_e, axis=1, keepdims=True)
                  + jnp.sum(pre_o * pre_o, axis=1, keepdims=True))


def bn_affine_kernel(pre_ref, scale_ref, shift_ref, out_ref):
    """Tiled per-channel affine: out = pre * scale[c] + shift[c]."""
    out_ref[0] = pre_ref[0] * scale_ref[...] + shift_ref[...]


def _pick_tile(L):
    for t in (2048, 1024, 512, 256, 128):
        if L % t == 0:
            return t
    return L


def ublock_forward(ip, params):
    """ip: (N, in_c + out_c, L) float32, PyTorch NCL layout. Returns (N, out_c, 2L)."""
    N, Cin, L = ip.shape
    Co = params["b1"].shape[0]
    L2 = 2 * L
    f32 = jnp.float32
    x = ip.astype(f32)

    # ---- tiny one-time weight plumbing (folds upsample + tap sharing) ----
    W1 = params["W1"].astype(f32)                     # (Co, Cin, 3)
    W2 = params["W2"].astype(f32)                     # (Co, Co, 3)
    Wc = params["Wc"].astype(f32)[:, :, 0]            # (Co, 2Co)
    w1c = jnp.concatenate([W1[:, :, 1] + W1[:, :, 2],
                           W1[:, :, 0] + W1[:, :, 1]], axis=0)   # (2Co, Cin)
    w1l = W1[:, :, 0]                                 # applied to x[j-1] (even)
    w1r = W1[:, :, 2]                                 # applied to x[j+1] (odd)
    w2e = jnp.concatenate([W2[:, :, 1], W2[:, :, 0]], axis=0)    # @ x1_even
    w2o = jnp.concatenate([W2[:, :, 2], W2[:, :, 1]], axis=0)    # @ x1_odd
    w2l = W2[:, :, 0]                                 # @ x1_odd[j-1] (even)
    w2r = W2[:, :, 2]                                 # @ x1_even[j+1] (odd)
    wca = Wc[:, :Co]
    wcb = Wc[:, Co:]
    b1 = params["b1"].astype(f32)[:, None]            # (Co, 1)
    b2 = params["b2"].astype(f32)[:, None]
    bc = params["bc"].astype(f32)[:, None]

    def full(a):
        return pl.BlockSpec(a.shape, lambda n, _nd=a.ndim: (0,) * _nd)

    # ---- pass 1: fused upsample + conv1 + conv2 + choke + BN partial stats ----
    pre, sums, ssqs = pl.pallas_call(
        ublock_main_kernel,
        grid=(N,),
        in_specs=[
            pl.BlockSpec((1, Cin, L), lambda n: (n, 0, 0)),
            full(w1c), full(w1l), full(w1r),
            full(w2e), full(w2o), full(w2l), full(w2r),
            full(wca), full(wcb), full(b1), full(b2), full(bc),
        ],
        out_specs=[
            pl.BlockSpec((1, 2 * Co, L), lambda n: (n, 0, 0)),
            pl.BlockSpec((1, Co, 1), lambda n: (n, 0, 0)),
            pl.BlockSpec((1, Co, 1), lambda n: (n, 0, 0)),
        ],
        out_shape=[
            jax.ShapeDtypeStruct((N, 2 * Co, L), f32),
            jax.ShapeDtypeStruct((N, Co, 1), f32),
            jax.ShapeDtypeStruct((N, Co, 1), f32),
        ],
        compiler_params=pltpu.CompilerParams(
            dimension_semantics=("parallel",),
            vmem_limit_bytes=32 * 1024 * 1024,
        ),
    )(x, w1c, w1l, w1r, w2e, w2o, w2l, w2r, wca, wcb, b1, b2, bc)

    # ---- finalize BN batch statistics (tiny (Co,)-sized XLA ops) ----
    cnt = float(N * L2)
    total = jnp.sum(sums[:, :, 0], axis=0)
    totsq = jnp.sum(ssqs[:, :, 0], axis=0)
    mean = total / cnt
    var = jnp.maximum(totsq / cnt - mean * mean, 0.0)     # biased (training) var
    inv = jax.lax.rsqrt(var + BN_EPS)
    scale = params["gamma"].astype(f32) * inv
    shift = params["beta"].astype(f32) - mean * scale
    scale2 = jnp.concatenate([scale, scale])[:, None]     # (2Co, 1): even|odd rows
    shift2 = jnp.concatenate([shift, shift])[:, None]

    # ---- pass 2: tiled, megacore-parallel BN affine ----
    Lt = _pick_tile(L)
    y = pl.pallas_call(
        bn_affine_kernel,
        grid=(N, L // Lt),
        in_specs=[
            pl.BlockSpec((1, 2 * Co, Lt), lambda n, l: (n, 0, l)),
            pl.BlockSpec((2 * Co, 1), lambda n, l: (0, 0)),
            pl.BlockSpec((2 * Co, 1), lambda n, l: (0, 0)),
        ],
        out_specs=pl.BlockSpec((1, 2 * Co, Lt), lambda n, l: (n, 0, l)),
        out_shape=jax.ShapeDtypeStruct((N, 2 * Co, L), f32),
        compiler_params=pltpu.CompilerParams(
            dimension_semantics=("parallel", "parallel"),
            vmem_limit_bytes=32 * 1024 * 1024,
        ),
    )(pre, scale2, shift2)

    # Re-interleave even/odd length streams back to NCL: (N, Co, 2L).
    # (stride-2 lane scatter has no robust in-kernel form; one cheap XLA pass.)
    return y.reshape(N, 2, Co, L).transpose(0, 2, 3, 1).reshape(N, Co, L2)


def ublock_reference(ip, params):
    """Pure-JAX (XLA conv) reference of the PyTorch forward, for verification."""
    def conv1d(x, w, b, pad):
        y = jax.lax.conv_general_dilated(
            x, w, window_strides=(1,), padding=((pad, pad),),
            dimension_numbers=("NCH", "OIH", "NCH"))
        return y + b[None, :, None]

    x = jnp.repeat(ip, 2, axis=-1)
    x1 = _leaky(conv1d(x, params["W1"], params["b1"], 1))
    x2 = _leaky(conv1d(x1, params["W2"], params["b2"], 1))
    xc = conv1d(jnp.concatenate([x1, x2], axis=1), params["Wc"], params["bc"], 0)
    a = _leaky(xc)
    mean = a.mean(axis=(0, 2), keepdims=True)
    var = ((a - mean) ** 2).mean(axis=(0, 2), keepdims=True)
    return ((a - mean) / jnp.sqrt(var + BN_EPS)) * params["gamma"][None, :, None] \
        + params["beta"][None, :, None]


if __name__ == "__main__":
    in_c, out_c = 4, 8
    N, L = 2, 128
    Cin = in_c + out_c                                   # input channels to the block

    keys = jax.random.split(jax.random.PRNGKey(0), 9)
    params = {
        "W1": 0.2 * jax.random.normal(keys[0], (out_c, Cin, 3), jnp.float32),
        "b1": 0.1 * jax.random.normal(keys[1], (out_c,), jnp.float32),
        "W2": 0.2 * jax.random.normal(keys[2], (out_c, out_c, 3), jnp.float32),
        "b2": 0.1 * jax.random.normal(keys[3], (out_c,), jnp.float32),
        "Wc": 0.2 * jax.random.normal(keys[4], (out_c, 2 * out_c, 1), jnp.float32),
        "bc": 0.1 * jax.random.normal(keys[5], (out_c,), jnp.float32),
        "gamma": 1.0 + 0.1 * jax.random.normal(keys[6], (out_c,), jnp.float32),
        "beta": 0.1 * jax.random.normal(keys[7], (out_c,), jnp.float32),
    }
    ip = jax.random.normal(keys[8], (N, Cin, L), jnp.float32)

    fwd = jax.jit(ublock_forward)
    out = jax.block_until_ready(fwd(ip, params))
    assert out.shape == (N, out_c, 2 * L), out.shape

    ref = ublock_reference(ip, params)
    err = float(jnp.max(jnp.abs(out - ref)))
    assert err < 1e-3, f"max abs err {err}"

    print("KERNEL_OK")
</pallas_src>

<mosaic_0001>
module attributes {stable_mosaic.version = 11 : i64} {
  func.func @ublock_main_kernel(%arg0: i32, %arg1: memref<1x12x128xf32, #tpu.memory_space<vmem>>, %arg2: memref<16x12xf32, #tpu.memory_space<vmem>>, %arg3: memref<8x12xf32, #tpu.memory_space<vmem>>, %arg4: memref<8x12xf32, #tpu.memory_space<vmem>>, %arg5: memref<16x8xf32, #tpu.memory_space<vmem>>, %arg6: memref<16x8xf32, #tpu.memory_space<vmem>>, %arg7: memref<8x8xf32, #tpu.memory_space<vmem>>, %arg8: memref<8x8xf32, #tpu.memory_space<vmem>>, %arg9: memref<8x8xf32, #tpu.memory_space<vmem>>, %arg10: memref<8x8xf32, #tpu.memory_space<vmem>>, %arg11: memref<8x1xf32, #tpu.memory_space<vmem>>, %arg12: memref<8x1xf32, #tpu.memory_space<vmem>>, %arg13: memref<8x1xf32, #tpu.memory_space<vmem>>, %arg14: memref<1x16x128xf32, #tpu.memory_space<vmem>>, %arg15: memref<1x8x1xf32, #tpu.memory_space<vmem>>, %arg16: memref<1x8x1xf32, #tpu.memory_space<vmem>>) attributes {dimension_semantics = [#tpu.dimension_semantics<parallel>], iteration_bounds = array<i64: 2>, scalar_prefetch = 0 : i64, scratch_operands = 0 : i64, tpu.core_type = #tpu.core_type<tc>, window_params = [{transform_indices = @transform_0, window_bounds = array<i64: 1, 12, 128>}, {pipeline_mode = #tpu.pipeline_mode<synchronous>, transform_indices = @transform_1, window_bounds = array<i64: 16, 12>}, {pipeline_mode = #tpu.pipeline_mode<synchronous>, transform_indices = @transform_2, window_bounds = array<i64: 8, 12>}, {pipeline_mode = #tpu.pipeline_mode<synchronous>, transform_indices = @transform_3, window_bounds = array<i64: 8, 12>}, {pipeline_mode = #tpu.pipeline_mode<synchronous>, transform_indices = @transform_4, window_bounds = array<i64: 16, 8>}, {pipeline_mode = #tpu.pipeline_mode<synchronous>, transform_indices = @transform_5, window_bounds = array<i64: 16, 8>}, {pipeline_mode = #tpu.pipeline_mode<synchronous>, transform_indices = @transform_6, window_bounds = array<i64: 8, 8>}, {pipeline_mode = #tpu.pipeline_mode<synchronous>, transform_indices = @transform_7, window_bounds = array<i64: 8, 8>}, {pipeline_mode = #tpu.pipeline_mode<synchronous>, transform_indices = @transform_8, window_bounds = array<i64: 8, 8>}, {pipeline_mode = #tpu.pipeline_mode<synchronous>, transform_indices = @transform_9, window_bounds = array<i64: 8, 8>}, {pipeline_mode = #tpu.pipeline_mode<synchronous>, transform_indices = @transform_10, window_bounds = array<i64: 8, 1>}, {pipeline_mode = #tpu.pipeline_mode<synchronous>, transform_indices = @transform_11, window_bounds = array<i64: 8, 1>}, {pipeline_mode = #tpu.pipeline_mode<synchronous>, transform_indices = @transform_12, window_bounds = array<i64: 8, 1>}, {transform_indices = @transform_13, window_bounds = array<i64: 1, 16, 128>}, {transform_indices = @transform_14, window_bounds = array<i64: 1, 8, 1>}, {transform_indices = @transform_15, window_bounds = array<i64: 1, 8, 1>}]} {
    %c0 = arith.constant 0 : index
    %c0_0 = arith.constant 0 : index
    %c0_1 = arith.constant 0 : index
    %0 = vector.load %arg1[%c0, %c0_0, %c0_1] : memref<1x12x128xf32, #tpu.memory_space<vmem>>, vector<1x12x128xf32>
    %1 = vector.shape_cast %0 : vector<1x12x128xf32> to vector<12x128xf32>
    %2 = tpu.iota {dimensions = array<i32: 1>} : vector<12x128xi32>
    %c0_i32 = arith.constant 0 : i32
    %3 = vector.broadcast %c0_i32 : i32 to vector<12x128xi32>
    %4 = arith.cmpi eq, %2, %3 : vector<12x128xi32>
    %c1_i32 = arith.constant 1 : i32
    %5 = tpu.dynamic_rotate %1 by %c1_i32 dim 1 : vector<12x128xf32>, i32 -> vector<12x128xf32>
    %cst = arith.constant 0.000000e+00 : f32
    %6 = vector.broadcast %cst : f32 to vector<12x128xf32>
    %7 = arith.select %4, %6, %5 : vector<12x128xi1>, vector<12x128xf32>
    %8 = tpu.iota {dimensions = array<i32: 1>} : vector<12x128xi32>
    %c127_i32 = arith.constant 127 : i32
    %9 = vector.broadcast %c127_i32 : i32 to vector<12x128xi32>
    %10 = arith.cmpi eq, %8, %9 : vector<12x128xi32>
    %c127_i32_2 = arith.constant 127 : i32
    %11 = tpu.dynamic_rotate %1 by %c127_i32_2 dim 1 : vector<12x128xf32>, i32 -> vector<12x128xf32>
    %cst_3 = arith.constant 0.000000e+00 : f32
    %12 = vector.broadcast %cst_3 : f32 to vector<12x128xf32>
    %13 = arith.select %10, %12, %11 : vector<12x128xi1>, vector<12x128xf32>
    %c0_4 = arith.constant 0 : index
    %c0_5 = arith.constant 0 : index
    %14 = vector.load %arg11[%c0_4, %c0_5] : memref<8x1xf32, #tpu.memory_space<vmem>>, vector<8x1xf32>
    %c0_6 = arith.constant 0 : index
    %c0_7 = arith.constant 0 : index
    %15 = vector.load %arg2[%c0_6, %c0_7] : memref<16x12xf32, #tpu.memory_space<vmem>>, vector<16x12xf32>
    %cst_8 = arith.constant dense<0.000000e+00> : vector<16x128xf32>
    %16 = tpu.matmul %15, %1, %cst_8 {dimension_numbers = #tpu.dot_dimension_numbers<[1], [0], [0], [1], [0, 0, 1, 1], [], []>} : vector<16x12xf32>, vector<12x128xf32>, vector<16x128xf32> -> vector<16x128xf32>
    %17 = vector.extract_strided_slice %16 {offsets = [0, 0], sizes = [8, 128], strides = [1, 1]} : vector<16x128xf32> to vector<8x128xf32>
    %c0_9 = arith.constant 0 : index
    %c0_10 = arith.constant 0 : index
    %18 = vector.load %arg3[%c0_9, %c0_10] : memref<8x12xf32, #tpu.memory_space<vmem>>, vector<8x12xf32>
    %cst_11 = arith.constant dense<0.000000e+00> : vector<8x128xf32>
    %19 = tpu.matmul %18, %7, %cst_11 {dimension_numbers = #tpu.dot_dimension_numbers<[1], [0], [0], [1], [0, 0, 1, 1], [], []>} : vector<8x12xf32>, vector<12x128xf32>, vector<8x128xf32> -> vector<8x128xf32>
    %20 = arith.addf %17, %19 : vector<8x128xf32>
    %21 = vector.broadcast %14 : vector<8x1xf32> to vector<8x128xf32>
    %22 = arith.addf %20, %21 : vector<8x128xf32>
    %23 = vector.extract_strided_slice %16 {offsets = [8, 0], sizes = [8, 128], strides = [1, 1]} : vector<16x128xf32> to vector<8x128xf32>
    %c0_12 = arith.constant 0 : index
    %c0_13 = arith.constant 0 : index
    %24 = vector.load %arg4[%c0_12, %c0_13] : memref<8x12xf32, #tpu.memory_space<vmem>>, vector<8x12xf32>
    %cst_14 = arith.constant dense<0.000000e+00> : vector<8x128xf32>
    %25 = tpu.matmul %24, %13, %cst_14 {dimension_numbers = #tpu.dot_dimension_numbers<[1], [0], [0], [1], [0, 0, 1, 1], [], []>} : vector<8x12xf32>, vector<12x128xf32>, vector<8x128xf32> -> vector<8x128xf32>
    %26 = arith.addf %23, %25 : vector<8x128xf32>
    %27 = vector.broadcast %14 : vector<8x1xf32> to vector<8x128xf32>
    %28 = arith.addf %26, %27 : vector<8x128xf32>
    %cst_15 = arith.constant 0.000000e+00 : f32
    %29 = vector.broadcast %cst_15 : f32 to vector<8x128xf32>
    %30 = arith.cmpf ogt, %22, %29 : vector<8x128xf32>
    %cst_16 = arith.constant 0.00999999977 : f32
    %31 = vector.broadcast %cst_16 : f32 to vector<8x128xf32>
    %32 = arith.mulf %31, %22 : vector<8x128xf32>
    %33 = arith.select %30, %22, %32 : vector<8x128xi1>, vector<8x128xf32>
    %cst_17 = arith.constant 0.000000e+00 : f32
    %34 = vector.broadcast %cst_17 : f32 to vector<8x128xf32>
    %35 = arith.cmpf ogt, %28, %34 : vector<8x128xf32>
    %cst_18 = arith.constant 0.00999999977 : f32
    %36 = vector.broadcast %cst_18 : f32 to vector<8x128xf32>
    %37 = arith.mulf %36, %28 : vector<8x128xf32>
    %38 = arith.select %35, %28, %37 : vector<8x128xi1>, vector<8x128xf32>
    %c0_19 = arith.constant 0 : index
    %c0_20 = arith.constant 0 : index
    %39 = vector.load %arg12[%c0_19, %c0_20] : memref<8x1xf32, #tpu.memory_space<vmem>>, vector<8x1xf32>
    %c0_21 = arith.constant 0 : index
    %c0_22 = arith.constant 0 : index
    %40 = vector.load %arg5[%c0_21, %c0_22] : memref<16x8xf32, #tpu.memory_space<vmem>>, vector<16x8xf32>
    %cst_23 = arith.constant dense<0.000000e+00> : vector<16x128xf32>
    %41 = tpu.matmul %40, %33, %cst_23 {dimension_numbers = #tpu.dot_dimension_numbers<[1], [0], [0], [1], [0, 0, 1, 1], [], []>} : vector<16x8xf32>, vector<8x128xf32>, vector<16x128xf32> -> vector<16x128xf32>
    %c0_24 = arith.constant 0 : index
    %c0_25 = arith.constant 0 : index
    %42 = vector.load %arg6[%c0_24, %c0_25] : memref<16x8xf32, #tpu.memory_space<vmem>>, vector<16x8xf32>
    %cst_26 = arith.constant dense<0.000000e+00> : vector<16x128xf32>
    %43 = tpu.matmul %42, %38, %cst_26 {dimension_numbers = #tpu.dot_dimension_numbers<[1], [0], [0], [1], [0, 0, 1, 1], [], []>} : vector<16x8xf32>, vector<8x128xf32>, vector<16x128xf32> -> vector<16x128xf32>
    %44 = vector.extract_strided_slice %41 {offsets = [0, 0], sizes = [8, 128], strides = [1, 1]} : vector<16x128xf32> to vector<8x128xf32>
    %45 = vector.extract_strided_slice %43 {offsets = [0, 0], sizes = [8, 128], strides = [1, 1]} : vector<16x128xf32> to vector<8x128xf32>
    %46 = arith.addf %44, %45 : vector<8x128xf32>
    %c0_27 = arith.constant 0 : index
    %c0_28 = arith.constant 0 : index
    %47 = vector.load %arg7[%c0_27, %c0_28] : memref<8x8xf32, #tpu.memory_space<vmem>>, vector<8x8xf32>
    %48 = tpu.iota {dimensions = array<i32: 1>} : vector<8x128xi32>
    %c0_i32_29 = arith.constant 0 : i32
    %49 = vector.broadcast %c0_i32_29 : i32 to vector<8x128xi32>
    %50 = arith.cmpi eq, %48, %49 : vector<8x128xi32>
    %c1_i32_30 = arith.constant 1 : i32
    %51 = tpu.dynamic_rotate %38 by %c1_i32_30 dim 1 : vector<8x128xf32>, i32 -> vector<8x128xf32>
    %cst_31 = arith.constant 0.000000e+00 : f32
    %52 = vector.broadcast %cst_31 : f32 to vector<8x128xf32>
    %53 = arith.select %50, %52, %51 : vector<8x128xi1>, vector<8x128xf32>
    %cst_32 = arith.constant dense<0.000000e+00> : vector<8x128xf32>
    %54 = tpu.matmul %47, %53, %cst_32 {dimension_numbers = #tpu.dot_dimension_numbers<[1], [0], [0], [1], [0, 0, 1, 1], [], []>} : vector<8x8xf32>, vector<8x128xf32>, vector<8x128xf32> -> vector<8x128xf32>
    %55 = arith.addf %46, %54 : vector<8x128xf32>
    %56 = vector.broadcast %39 : vector<8x1xf32> to vector<8x128xf32>
    %57 = arith.addf %55, %56 : vector<8x128xf32>
    %58 = vector.extract_strided_slice %41 {offsets = [8, 0], sizes = [8, 128], strides = [1, 1]} : vector<16x128xf32> to vector<8x128xf32>
    %59 = vector.extract_strided_slice %43 {offsets = [8, 0], sizes = [8, 128], strides = [1, 1]} : vector<16x128xf32> to vector<8x128xf32>
    %60 = arith.addf %58, %59 : vector<8x128xf32>
    %c0_33 = arith.constant 0 : index
    %c0_34 = arith.constant 0 : index
    %61 = vector.load %arg8[%c0_33, %c0_34] : memref<8x8xf32, #tpu.memory_space<vmem>>, vector<8x8xf32>
    %62 = tpu.iota {dimensions = array<i32: 1>} : vector<8x128xi32>
    %c127_i32_35 = arith.constant 127 : i32
    %63 = vector.broadcast %c127_i32_35 : i32 to vector<8x128xi32>
    %64 = arith.cmpi eq, %62, %63 : vector<8x128xi32>
    %c127_i32_36 = arith.constant 127 : i32
    %65 = tpu.dynamic_rotate %33 by %c127_i32_36 dim 1 : vector<8x128xf32>, i32 -> vector<8x128xf32>
    %cst_37 = arith.constant 0.000000e+00 : f32
    %66 = vector.broadcast %cst_37 : f32 to vector<8x128xf32>
    %67 = arith.select %64, %66, %65 : vector<8x128xi1>, vector<8x128xf32>
    %cst_38 = arith.constant dense<0.000000e+00> : vector<8x128xf32>
    %68 = tpu.matmul %61, %67, %cst_38 {dimension_numbers = #tpu.dot_dimension_numbers<[1], [0], [0], [1], [0, 0, 1, 1], [], []>} : vector<8x8xf32>, vector<8x128xf32>, vector<8x128xf32> -> vector<8x128xf32>
    %69 = arith.addf %60, %68 : vector<8x128xf32>
    %70 = vector.broadcast %39 : vector<8x1xf32> to vector<8x128xf32>
    %71 = arith.addf %69, %70 : vector<8x128xf32>
    %cst_39 = arith.constant 0.000000e+00 : f32
    %72 = vector.broadcast %cst_39 : f32 to vector<8x128xf32>
    %73 = arith.cmpf ogt, %57, %72 : vector<8x128xf32>
    %cst_40 = arith.constant 0.00999999977 : f32
    %74 = vector.broadcast %cst_40 : f32 to vector<8x128xf32>
    %75 = arith.mulf %74, %57 : vector<8x128xf32>
    %76 = arith.select %73, %57, %75 : vector<8x128xi1>, vector<8x128xf32>
    %cst_41 = arith.constant 0.000000e+00 : f32
    %77 = vector.broadcast %cst_41 : f32 to vector<8x128xf32>
    %78 = arith.cmpf ogt, %71, %77 : vector<8x128xf32>
    %cst_42 = arith.constant 0.00999999977 : f32
    %79 = vector.broadcast %cst_42 : f32 to vector<8x128xf32>
    %80 = arith.mulf %79, %71 : vector<8x128xf32>
    %81 = arith.select %78, %71, %80 : vector<8x128xi1>, vector<8x128xf32>
    %c0_43 = arith.constant 0 : index
    %c0_44 = arith.constant 0 : index
    %82 = vector.load %arg13[%c0_43, %c0_44] : memref<8x1xf32, #tpu.memory_space<vmem>>, vector<8x1xf32>
    %c0_45 = arith.constant 0 : index
    %c0_46 = arith.constant 0 : index
    %83 = vector.load %arg9[%c0_45, %c0_46] : memref<8x8xf32, #tpu.memory_space<vmem>>, vector<8x8xf32>
    %cst_47 = arith.constant dense<0.000000e+00> : vector<8x128xf32>
    %84 = tpu.matmul %83, %33, %cst_47 {dimension_numbers = #tpu.dot_dimension_numbers<[1], [0], [0], [1], [0, 0, 1, 1], [], []>} : vector<8x8xf32>, vector<8x128xf32>, vector<8x128xf32> -> vector<8x128xf32>
    %c0_48 = arith.constant 0 : index
    %c0_49 = arith.constant 0 : index
    %85 = vector.load %arg10[%c0_48, %c0_49] : memref<8x8xf32, #tpu.memory_space<vmem>>, vector<8x8xf32>
    %cst_50 = arith.constant dense<0.000000e+00> : vector<8x128xf32>
    %86 = tpu.matmul %85, %76, %cst_50 {dimension_numbers = #tpu.dot_dimension_numbers<[1], [0], [0], [1], [0, 0, 1, 1], [], []>} : vector<8x8xf32>, vector<8x128xf32>, vector<8x128xf32> -> vector<8x128xf32>
    %87 = arith.addf %84, %86 : vector<8x128xf32>
    %88 = vector.broadcast %82 : vector<8x1xf32> to vector<8x128xf32>
    %89 = arith.addf %87, %88 : vector<8x128xf32>
    %cst_51 = arith.constant 0.000000e+00 : f32
    %90 = vector.broadcast %cst_51 : f32 to vector<8x128xf32>
    %91 = arith.cmpf ogt, %89, %90 : vector<8x128xf32>
    %cst_52 = arith.constant 0.00999999977 : f32
    %92 = vector.broadcast %cst_52 : f32 to vector<8x128xf32>
    %93 = arith.mulf %92, %89 : vector<8x128xf32>
    %94 = arith.select %91, %89, %93 : vector<8x128xi1>, vector<8x128xf32>
    %c0_53 = arith.constant 0 : index
    %c0_54 = arith.constant 0 : index
    %95 = vector.load %arg9[%c0_53, %c0_54] : memref<8x8xf32, #tpu.memory_space<vmem>>, vector<8x8xf32>
    %cst_55 = arith.constant dense<0.000000e+00> : vector<8x128xf32>
    %96 = tpu.matmul %95, %38, %cst_55 {dimension_numbers = #tpu.dot_dimension_numbers<[1], [0], [0], [1], [0, 0, 1, 1], [], []>} : vector<8x8xf32>, vector<8x128xf32>, vector<8x128xf32> -> vector<8x128xf32>
    %c0_56 = arith.constant 0 : index
    %c0_57 = arith.constant 0 : index
    %97 = vector.load %arg10[%c0_56, %c0_57] : memref<8x8xf32, #tpu.memory_space<vmem>>, vector<8x8xf32>
    %cst_58 = arith.constant dense<0.000000e+00> : vector<8x128xf32>
    %98 = tpu.matmul %97, %81, %cst_58 {dimension_numbers = #tpu.dot_dimension_numbers<[1], [0], [0], [1], [0, 0, 1, 1], [], []>} : vector<8x8xf32>, vector<8x128xf32>, vector<8x128xf32> -> vector<8x128xf32>
    %99 = arith.addf %96, %98 : vector<8x128xf32>
    %100 = vector.broadcast %82 : vector<8x1xf32> to vector<8x128xf32>
    %101 = arith.addf %99, %100 : vector<8x128xf32>
    %cst_59 = arith.constant 0.000000e+00 : f32
    %102 = vector.broadcast %cst_59 : f32 to vector<8x128xf32>
    %103 = arith.cmpf ogt, %101, %102 : vector<8x128xf32>
    %cst_60 = arith.constant 0.00999999977 : f32
    %104 = vector.broadcast %cst_60 : f32 to vector<8x128xf32>
    %105 = arith.mulf %104, %101 : vector<8x128xf32>
    %106 = arith.select %103, %101, %105 : vector<8x128xi1>, vector<8x128xf32>
    %c0_61 = arith.constant 0 : index
    %c0_62 = arith.constant 0 : index
    %c0_63 = arith.constant 0 : index
    %107 = vector.load %arg14[%c0_61, %c0_62, %c0_63] : memref<1x16x128xf32, #tpu.memory_space<vmem>>, vector<1x8x128xf32>
    %108 = vector.shape_cast %107 : vector<1x8x128xf32> to vector<8x128xf32>
    %109 = vector.shape_cast %94 : vector<8x128xf32> to vector<1x8x128xf32>
    tpu.vector_store %arg14[%c0_61, %c0_62, %c0_63], %109 {strides = array<i32>} : memref<1x16x128xf32, #tpu.memory_space<vmem>>, vector<1x8x128xf32>,
    %c0_64 = arith.constant 0 : index
    %c8 = arith.constant 8 : index
    %c0_65 = arith.constant 0 : index
    %110 = vector.load %arg14[%c0_64, %c8, %c0_65] : memref<1x16x128xf32, #tpu.memory_space<vmem>>, vector<1x8x128xf32>
    %111 = vector.shape_cast %110 : vector<1x8x128xf32> to vector<8x128xf32>
    %112 = vector.shape_cast %106 : vector<8x128xf32> to vector<1x8x128xf32>
    tpu.vector_store %arg14[%c0_64, %c8, %c0_65], %112 {strides = array<i32>} : memref<1x16x128xf32, #tpu.memory_space<vmem>>, vector<1x8x128xf32>,
    %cst_66 = arith.constant dense<0.000000e+00> : vector<8xf32>
    %113 = vector.multi_reduction <add>, %94, %cst_66 [1] : vector<8x128xf32> to vector<8xf32>
    %114 = vector.shape_cast %113 : vector<8xf32> to vector<8x1xf32>
    %cst_67 = arith.constant dense<0.000000e+00> : vector<8xf32>
    %115 = vector.multi_reduction <add>, %106, %cst_67 [1] : vector<8x128xf32> to vector<8xf32>
    %116 = vector.shape_cast %115 : vector<8xf32> to vector<8x1xf32>
    %117 = arith.addf %114, %116 : vector<8x1xf32>
    %c0_68 = arith.constant 0 : index
    %c0_69 = arith.constant 0 : index
    %c0_70 = arith.constant 0 : index
    %118 = vector.load %arg15[%c0_68, %c0_69, %c0_70] : memref<1x8x1xf32, #tpu.memory_space<vmem>>, vector<1x8x1xf32>
    %119 = vector.shape_cast %118 : vector<1x8x1xf32> to vector<8x1xf32>
    %120 = vector.shape_cast %117 : vector<8x1xf32> to vector<1x8x1xf32>
    tpu.vector_store %arg15[%c0_68, %c0_69, %c0_70], %120 {strides = array<i32>} : memref<1x8x1xf32, #tpu.memory_space<vmem>>, vector<1x8x1xf32>,
    %121 = arith.mulf %94, %94 : vector<8x128xf32>
    %cst_71 = arith.constant dense<0.000000e+00> : vector<8xf32>
    %122 = vector.multi_reduction <add>, %121, %cst_71 [1] : vector<8x128xf32> to vector<8xf32>
    %123 = vector.shape_cast %122 : vector<8xf32> to vector<8x1xf32>
    %124 = arith.mulf %106, %106 : vector<8x128xf32>
    %cst_72 = arith.constant dense<0.000000e+00> : vector<8xf32>
    %125 = vector.multi_reduction <add>, %124, %cst_72 [1] : vector<8x128xf32> to vector<8xf32>
    %126 = vector.shape_cast %125 : vector<8xf32> to vector<8x1xf32>
    %127 = arith.addf %123, %126 : vector<8x1xf32>
    %c0_73 = arith.constant 0 : index
    %c0_74 = arith.constant 0 : index
    %c0_75 = arith.constant 0 : index
    %128 = vector.load %arg16[%c0_73, %c0_74, %c0_75] : memref<1x8x1xf32, #tpu.memory_space<vmem>>, vector<1x8x1xf32>
    %129 = vector.shape_cast %128 : vector<1x8x1xf32> to vector<8x1xf32>
    %130 = vector.shape_cast %127 : vector<8x1xf32> to vector<1x8x1xf32>
    tpu.vector_store %arg16[%c0_73, %c0_74, %c0_75], %130 {strides = array<i32>} : memref<1x8x1xf32, #tpu.memory_space<vmem>>, vector<1x8x1xf32>,
    return
  }
  func.func @transform_0(%arg0: i32) -> (i32, i32, i32) {
    %c0_i32 = arith.constant 0 : i32
    %c0_i32_0 = arith.constant 0 : i32
    %c0_i32_1 = arith.constant 0 : i32
    return %arg0, %c0_i32, %c0_i32_0 : i32, i32, i32
  }
  func.func @transform_1(%arg0: i32) -> (i32, i32) {
    %c0_i32 = arith.constant 0 : i32
    %c0_i32_0 = arith.constant 0 : i32
    %c0_i32_1 = arith.constant 0 : i32
    return %c0_i32, %c0_i32_0 : i32, i32
  }
  func.func @transform_2(%arg0: i32) -> (i32, i32) {
    %c0_i32 = arith.constant 0 : i32
    %c0_i32_0 = arith.constant 0 : i32
    %c0_i32_1 = arith.constant 0 : i32
    return %c0_i32, %c0_i32_0 : i32, i32
  }
  func.func @transform_3(%arg0: i32) -> (i32, i32) {
    %c0_i32 = arith.constant 0 : i32
    %c0_i32_0 = arith.constant 0 : i32
    %c0_i32_1 = arith.constant 0 : i32
    return %c0_i32, %c0_i32_0 : i32, i32
  }
  func.func @transform_4(%arg0: i32) -> (i32, i32) {
    %c0_i32 = arith.constant 0 : i32
    %c0_i32_0 = arith.constant 0 : i32
    %c0_i32_1 = arith.constant 0 : i32
    return %c0_i32, %c0_i32_0 : i32, i32
  }
  func.func @transform_5(%arg0: i32) -> (i32, i32) {
    %c0_i32 = arith.constant 0 : i32
    %c0_i32_0 = arith.constant 0 : i32
    %c0_i32_1 = arith.constant 0 : i32
    return %c0_i32, %c0_i32_0 : i32, i32
  }
  func.func @transform_6(%arg0: i32) -> (i32, i32) {
    %c0_i32 = arith.constant 0 : i32
    %c0_i32_0 = arith.constant 0 : i32
    %c0_i32_1 = arith.constant 0 : i32
    return %c0_i32, %c0_i32_0 : i32, i32
  }
  func.func @transform_7(%arg0: i32) -> (i32, i32) {
    %c0_i32 = arith.constant 0 : i32
    %c0_i32_0 = arith.constant 0 : i32
    %c0_i32_1 = arith.constant 0 : i32
    return %c0_i32, %c0_i32_0 : i32, i32
  }
  func.func @transform_8(%arg0: i32) -> (i32, i32) {
    %c0_i32 = arith.constant 0 : i32
    %c0_i32_0 = arith.constant 0 : i32
    %c0_i32_1 = arith.constant 0 : i32
    return %c0_i32, %c0_i32_0 : i32, i32
  }
  func.func @transform_9(%arg0: i32) -> (i32, i32) {
    %c0_i32 = arith.constant 0 : i32
    %c0_i32_0 = arith.constant 0 : i32
    %c0_i32_1 = arith.constant 0 : i32
    return %c0_i32, %c0_i32_0 : i32, i32
  }
  func.func @transform_10(%arg0: i32) -> (i32, i32) {
    %c0_i32 = arith.constant 0 : i32
    %c0_i32_0 = arith.constant 0 : i32
    %c0_i32_1 = arith.constant 0 : i32
    return %c0_i32, %c0_i32_0 : i32, i32
  }
  func.func @transform_11(%arg0: i32) -> (i32, i32) {
    %c0_i32 = arith.constant 0 : i32
    %c0_i32_0 = arith.constant 0 : i32
    %c0_i32_1 = arith.constant 0 : i32
    return %c0_i32, %c0_i32_0 : i32, i32
  }
  func.func @transform_12(%arg0: i32) -> (i32, i32) {
    %c0_i32 = arith.constant 0 : i32
    %c0_i32_0 = arith.constant 0 : i32
    %c0_i32_1 = arith.constant 0 : i32
    return %c0_i32, %c0_i32_0 : i32, i32
  }
  func.func @transform_13(%arg0: i32) -> (i32, i32, i32) {
    %c0_i32 = arith.constant 0 : i32
    %c0_i32_0 = arith.constant 0 : i32
    %c0_i32_1 = arith.constant 0 : i32
    return %arg0, %c0_i32, %c0_i32_0 : i32, i32, i32
  }
  func.func @transform_14(%arg0: i32) -> (i32, i32, i32) {
    %c0_i32 = arith.constant 0 : i32
    %c0_i32_0 = arith.constant 0 : i32
    %c0_i32_1 = arith.constant 0 : i32
    return %arg0, %c0_i32, %c0_i32_0 : i32, i32, i32
  }
  func.func @transform_15(%arg0: i32) -> (i32, i32, i32) {
    %c0_i32 = arith.constant 0 : i32
    %c0_i32_0 = arith.constant 0 : i32
    %c0_i32_1 = arith.constant 0 : i32
    return %arg0, %c0_i32, %c0_i32_0 : i32, i32, i32
  }
}

module attributes {stable_mosaic.version = 11 : i64} {
  func.func @bn_affine_kernel(%arg0: i32, %arg1: i32, %arg2: memref<1x16x128xf32, #tpu.memory_space<vmem>>, %arg3: memref<16x1xf32, #tpu.memory_space<vmem>>, %arg4: memref<16x1xf32, #tpu.memory_space<vmem>>, %arg5: memref<1x16x128xf32, #tpu.memory_space<vmem>>) attributes {dimension_semantics = [#tpu.dimension_semantics<parallel>, #tpu.dimension_semantics<parallel>], iteration_bounds = array<i64: 2, 1>, scalar_prefetch = 0 : i64, scratch_operands = 0 : i64, tpu.core_type = #tpu.core_type<tc>, window_params = [{transform_indices = @transform_0, window_bounds = array<i64: 1, 16, 128>}, {pipeline_mode = #tpu.pipeline_mode<synchronous>, transform_indices = @transform_1, window_bounds = array<i64: 16, 1>}, {pipeline_mode = #tpu.pipeline_mode<synchronous>, transform_indices = @transform_2, window_bounds = array<i64: 16, 1>}, {transform_indices = @transform_3, window_bounds = array<i64: 1, 16, 128>}]} {
    %c0 = arith.constant 0 : index
    %c0_0 = arith.constant 0 : index
    %c0_1 = arith.constant 0 : index
    %0 = vector.load %arg2[%c0, %c0_0, %c0_1] : memref<1x16x128xf32, #tpu.memory_space<vmem>>, vector<1x16x128xf32>
    %1 = vector.shape_cast %0 : vector<1x16x128xf32> to vector<16x128xf32>
    %c0_2 = arith.constant 0 : index
    %c0_3 = arith.constant 0 : index
    %2 = vector.load %arg3[%c0_2, %c0_3] : memref<16x1xf32, #tpu.memory_space<vmem>>, vector<16x1xf32>
    %3 = vector.broadcast %2 : vector<16x1xf32> to vector<16x128xf32>
    %4 = arith.mulf %1, %3 : vector<16x128xf32>
    %c0_4 = arith.constant 0 : index
    %c0_5 = arith.constant 0 : index
    %5 = vector.load %arg4[%c0_4, %c0_5] : memref<16x1xf32, #tpu.memory_space<vmem>>, vector<16x1xf32>
    %6 = vector.broadcast %5 : vector<16x1xf32> to vector<16x128xf32>
    %7 = arith.addf %4, %6 : vector<16x128xf32>
    %c0_6 = arith.constant 0 : index
    %c0_7 = arith.constant 0 : index
    %c0_8 = arith.constant 0 : index
    %8 = vector.load %arg5[%c0_6, %c0_7, %c0_8] : memref<1x16x128xf32, #tpu.memory_space<vmem>>, vector<1x16x128xf32>
    %9 = vector.shape_cast %8 : vector<1x16x128xf32> to vector<16x128xf32>
    %10 = vector.shape_cast %7 : vector<16x128xf32> to vector<1x16x128xf32>
    tpu.vector_store %arg5[%c0_6, %c0_7, %c0_8], %10 {strides = array<i32>} : memref<1x16x128xf32, #tpu.memory_space<vmem>>, vector<1x16x128xf32>,
    return
  }
  func.func @transform_0(%arg0: i32, %arg1: i32) -> (i32, i32, i32) {
    %c0_i32 = arith.constant 0 : i32
    %c0_i32_0 = arith.constant 0 : i32
    return %arg0, %c0_i32, %arg1 : i32, i32, i32
  }
  func.func @transform_1(%arg0: i32, %arg1: i32) -> (i32, i32) {
    %c0_i32 = arith.constant 0 : i32
    %c0_i32_0 = arith.constant 0 : i32
    %c0_i32_1 = arith.constant 0 : i32
    return %c0_i32, %c0_i32_0 : i32, i32
  }
  func.func @transform_2(%arg0: i32, %arg1: i32) -> (i32, i32) {
    %c0_i32 = arith.constant 0 : i32
    %c0_i32_0 = arith.constant 0 : i32
    %c0_i32_1 = arith.constant 0 : i32
    return %c0_i32, %c0_i32_0 : i32, i32
  }
  func.func @transform_3(%arg0: i32, %arg1: i32) -> (i32, i32, i32) {
    %c0_i32 = arith.constant 0 : i32
    %c0_i32_0 = arith.constant 0 : i32
    return %arg0, %c0_i32, %arg1 : i32, i32, i32
  }
}

</mosaic_0001>

<llo_original>
// kernel: ublock_forward.3
$region0: #{ublock_forward.3}
  #allocation0 [shape = 'u32[]', space=smem, size = 0x4, offset = 0x4, fixed_abs, tag = 'smem constant byte address 0x4 - core index']
  #allocation1 [shape = 'u32[72,128]{1,0:T(1,128)}', space=vmem, size = 0x9000, scoped, tag = 'internal scratch']
  %s0 = inlined_call_operand.vmem [shape: f32[2,16,128], index: 0, kind: input, shape index: {}]
  %s1 = inlined_call_operand.vmem [shape: f32[16,1], index: 1, kind: input, shape index: {}]
  %s2 = inlined_call_operand.vmem [shape: f32[16,1], index: 2, kind: input, shape index: {}]
  %s3 = inlined_call_operand.vmem [shape: f32[2,16,128], index: 3, kind: output, shape index: {}]
  %s4 = sld [smem:[#allocation0]]
  $region45: #{ublock_forward.3} parent=0
    _
  %s6 = ssub.s32 1, %s4
  %s7 = scalar_select 0, %s6, %s4
  loop: start=0, step=1, limit=4
  $region2: #{ublock_forward.3} parent=0 // loop_pre_header
    _
  $region3: #{ublock_forward.3} parent=0 // loop_header
    %s9 = sphi 0, %s13
    %p10 = scmp.ge.s32.totalorder %s9, 4
    %s16 = sphi 0, %s28
    %s17 = sphi 0, %s24
    %s18 = sphi 0, %s16
    %s19 = sphi 0, %s17
    %s20 = sphi 0, %s18
    %s21 = sphi 0, %s19
    %s33 = sphi 0, %s35
    %s36 = sphi 0, %s33
    %s37 = sphi 0, %s36
    %s53 = sphi 0, %s37
    %s57 = sphi 0, %s57
    %s59 = sphi 0, %s57
    %s60 = sphi 0, %s59
    %s74 = sphi 0, %s60
    %s78 = sphi 0, %s78
    %s80 = sphi 0, %s78
    %s81 = sphi 0, %s80
    %s95 = sphi 0, %s81
    %s103 = sphi 0, %s105
    %s106 = sphi 0, %s103
    %s107 = sphi 0, %s106
    %s123 = sphi 0, %s107
  $region4: #{ublock_forward.3} parent=0 // loop_header_branch
    %12 = sbr.rel (%p10) target = $region8
  $region5: #{ublock_forward.3} parent=0 // loop_body
    %s14 = ssub.s32 %s9, 1
    %s15 = ssub.s32 %s9, 2
    %s22 = sadd.s32 1, %s17
    %p23 = scmp.ge.s32.totalorder %s22, 1
    %s24 = scalar_select %p23, 0, %s22
    %s25 = sadd.s32 1, %s16
    %s26 = scalar_select %p23, %s25, %s16
    %p27 = scmp.ge.s32.totalorder %s26, 2
    %s28 = scalar_select %p27, 0, %s26
    %s29 = ssub.s32 %s16, %s28
    %s30 = ssub.s32 %s17, %s24
    %s31 = sor.u32 %s29, %s30
    %p32 = scmp.eq.s32.totalorder %s31, 0
    %s34 = sadd.s32 %s33, 1
    %s35 = scalar_select %p32, %s33, %s34
    %p38 = pneg %p32
    %p39 = scmp.eq.s32.totalorder %s9, 1
    %p40 = por %p38, %p39
    %p41 = scmp.ne.s32.totalorder %s33, %s36
    %p42 = scmp.eq.s32.totalorder %s9, 0
    %p43 = por %p41, %p42
    %p44 = scmp.ne.s32.totalorder %s33, %s36
    %p45 = scmp.eq.s32.totalorder %s14, 1
    %p46 = por %p44, %p45
    %p47 = scmp.ne.s32.totalorder %s36, %s37
    %p48 = scmp.eq.s32.totalorder %s14, 0
    %p49 = por %p47, %p48
    %p50 = scmp.ne.s32.totalorder %s36, %s37
    %p51 = scmp.eq.s32.totalorder %s15, 1
    %p52 = por %p50, %p51
    %p54 = scmp.ne.s32.totalorder %s37, %s53
    %p55 = scmp.eq.s32.totalorder %s15, 0
    %p56 = por %p54, %p55
    %s58 = sadd.s32 %s57, 1
    %p61 = scmp.eq.s32.totalorder %s9, 1
    %p62 = scmp.ne.s32.totalorder %s57, %s59
    %p63 = scmp.eq.s32.totalorder %s9, 0
    %p64 = por %p62, %p63
    %p65 = scmp.ne.s32.totalorder %s57, %s59
    %p66 = scmp.eq.s32.totalorder %s14, 1
    %p67 = por %p65, %p66
    %p68 = scmp.ne.s32.totalorder %s59, %s60
    %p69 = scmp.eq.s32.totalorder %s14, 0
    %p70 = por %p68, %p69
    %p71 = scmp.ne.s32.totalorder %s59, %s60
    %p72 = scmp.eq.s32.totalorder %s15, 1
    %p73 = por %p71, %p72
    %p75 = scmp.ne.s32.totalorder %s60, %s74
    %p76 = scmp.eq.s32.totalorder %s15, 0
    %p77 = por %p75, %p76
    %s79 = sadd.s32 %s78, 1
    %p82 = scmp.eq.s32.totalorder %s9, 1
    %p83 = scmp.ne.s32.totalorder %s78, %s80
    %p84 = scmp.eq.s32.totalorder %s9, 0
    %p85 = por %p83, %p84
    %p86 = scmp.ne.s32.totalorder %s78, %s80
    %p87 = scmp.eq.s32.totalorder %s14, 1
    %p88 = por %p86, %p87
    %p89 = scmp.ne.s32.totalorder %s80, %s81
    %p90 = scmp.eq.s32.totalorder %s14, 0
    %p91 = por %p89, %p90
    %p92 = scmp.ne.s32.totalorder %s80, %s81
    %p93 = scmp.eq.s32.totalorder %s15, 1
    %p94 = por %p92, %p93
    %p96 = scmp.ne.s32.totalorder %s81, %s95
    %p97 = scmp.eq.s32.totalorder %s15, 0
    %p98 = por %p96, %p97
    %s99 = ssub.s32 %s16, %s28
    %s100 = ssub.s32 %s17, %s24
    %s101 = sor.u32 %s99, %s100
    %p102 = scmp.eq.s32.totalorder %s101, 0
    %s104 = sadd.s32 %s103, 1
    %s105 = scalar_select %p102, %s103, %s104
    %p108 = pneg %p102
    %p109 = scmp.eq.s32.totalorder %s9, 1
    %p110 = por %p108, %p109
    %p111 = scmp.ne.s32.totalorder %s103, %s106
    %p112 = scmp.eq.s32.totalorder %s9, 0
    %p113 = por %p111, %p112
    %p114 = scmp.ne.s32.totalorder %s103, %s106
    %p115 = scmp.eq.s32.totalorder %s14, 1
    %p116 = por %p114, %p115
    %p117 = scmp.ne.s32.totalorder %s106, %s107
    %p118 = scmp.eq.s32.totalorder %s14, 0
    %p119 = por %p117, %p118
    %p120 = scmp.ne.s32.totalorder %s106, %s107
    %p121 = scmp.eq.s32.totalorder %s15, 1
    %p122 = por %p120, %p121
    %p124 = scmp.ne.s32.totalorder %s107, %s123
    %p125 = scmp.eq.s32.totalorder %s15, 0
    %p126 = por %p124, %p125
    %p127 = scmp.le.s32.totalorder 1, %s9
    %p128 = scmp.lt.s32.totalorder %s9, 3
    %p129 = pnand %p127, %p128
    %p130 = pneg %p129
    // Predicated region
    $region9: #{ublock_forward.3} parent=5 // pred_check
      _
    $region10: #{ublock_forward.3} parent=5 // pred_check_branch
      %132 = sbr.rel (%p129) target = $region12
    $region11: #{ublock_forward.3} parent=5 // pred_region
      %s133 = ssub.s32 %s9, 1
      // Predicated region
      $region13: #{ublock_forward.3} parent=11 // pred_check
        %p134 = pneg %p70
      $region14: #{ublock_forward.3} parent=11 // pred_check_branch
        %136 = sbr.rel (%p134) target = $region16
      $region15: #{ublock_forward.3} parent=11 // pred_region
        _
      $region16: #{ublock_forward.3} parent=11 // pred_fallthru
        _
      // Predicated region
      $region17: #{ublock_forward.3} parent=11 // pred_check
        %p137 = pneg %p91
      $region18: #{ublock_forward.3} parent=11 // pred_check_branch
        %139 = sbr.rel (%p137) target = $region20
      $region19: #{ublock_forward.3} parent=11 // pred_region
        _
      $region20: #{ublock_forward.3} parent=11 // pred_fallthru
        _
    $region12: #{ublock_forward.3} parent=5 // pred_fallthru
      _
    %p140 = scmp.lt.s32.totalorder %s9, 2
    // Predicated region
    $region21: #{ublock_forward.3} parent=5 // pred_check
      %p141 = pneg %p140
    $region22: #{ublock_forward.3} parent=5 // pred_check_branch
      %143 = sbr.rel (%p141) target = $region24
    $region23: #{ublock_forward.3} parent=5 // pred_region
      // Predicated region
      $region25: #{ublock_forward.3} parent=23 // pred_check
        %p144 = pneg %p43
      $region26: #{ublock_forward.3} parent=23 // pred_check_branch
        %146 = sbr.rel (%p144) target = $region28
      $region27: #{ublock_forward.3} parent=23 // pred_region
        %p147 = scmp.lt.s32.totalorder %s16, 1
        %s148 = scalar_select %p147, %s16, 1
        %p149 = scmp.lt.s32.totalorder %s17, 0
        %s150 = scalar_select %p149, %s17, 0
        %s151 = smul.addr %s148, 2
        %s152 = sadd.s32 %s150, %s151
        %s153 = smul.addr %s152, 8
        %s154 = scalar_lea.vmem %s0, %s153
      $region28: #{ublock_forward.3} parent=23 // pred_fallthru
        _
    $region24: #{ublock_forward.3} parent=5 // pred_fallthru
      _
    %p155 = scmp.le.s32.totalorder 1, %s9
    %p156 = scmp.lt.s32.totalorder %s9, 3
    %p157 = pnand %p155, %p156
    %p158 = pneg %p157
    // Predicated region
    $region29: #{ublock_forward.3} parent=5 // pred_check
      _
    $region30: #{ublock_forward.3} parent=5 // pred_check_branch
      %160 = sbr.rel (%p157) target = $region32
    $region31: #{ublock_forward.3} parent=5 // pred_region
      %s161 = ssub.s32 %s9, 1
      %p162 = scmp.lt.s32.totalorder %s18, 1
      %s163 = scalar_select %p162, %s18, 1
      %p164 = scmp.lt.s32.totalorder %s19, 0
      %s165 = scalar_select %p164, %s19, 0
      %s166 = smul.addr %s163, 2
      %s167 = sadd.s32 %s165, %s166
      %s168 = smul.addr %s167, 8
      %s169 = scalar_lea.vmem %s0, %s168
      %p170 = pneg %p49
      %p171 = pneg %p46
      %p172 = pneg %p70
      %p173 = pneg %p67
      %p174 = pneg %p91
      %p175 = pneg %p88
      %p176 = pneg %p119
      %p177 = pneg %p116
      %p178 = scmp.lt.s32.totalorder %s18, 1
      %s179 = scalar_select %p178, %s18, 1
      %p180 = scmp.lt.s32.totalorder %s19, 0
      %s181 = scalar_select %p180, %s19, 0
      %s182 = smul.addr %s179, 2
      %s183 = sadd.s32 %s181, %s182
      %s184 = smul.addr %s183, 8
      %s185 = scalar_lea.vmem %s3, %s184
      %p186 = scmp.lt.s32.totalorder %s18, 1
      %s187 = scalar_select %p186, %s18, 1
      %p188 = scmp.lt.s32.totalorder %s19, 0
      %s189 = scalar_select %p188, %s19, 0
      %s190 = smul.addr %s187, 2
      %s191 = sadd.s32 %s189, %s190
      %s192 = smul.addr %s191, 8
      %s193 = scalar_lea.vmem %s0, %s192
      %p194 = scmp.lt.s32.totalorder %s18, 1
      %s195 = scalar_select %p194, %s18, 1
      %p196 = scmp.lt.s32.totalorder %s19, 0
      %s197 = scalar_select %p196, %s19, 0
      %s198 = smul.addr %s195, 2
      %s199 = sadd.s32 %s197, %s198
      %s200 = smul.addr %s199, 8
      %s201 = scalar_lea.vmem %s3, %s200
      %v202 = vld [vmem:[%s193] sm:$0xff]
      %v203 = vld [vmem:[%s193 + $0x8] sm:$0xff]
      %v204 = vld [vmem:[%s1] sm:$0xff]
      %v205 = vld [vmem:[%s1 + $0x8] sm:$0xff]
      %207 = vset.pattern.permute.xlu0 0
      %208 = vperm.xlu0 %207, %v204
      %v209 = vpop.permute.xlu0 %208
      %212 = vset.pattern.permute.xlu0 0
      %213 = vperm.xlu0 %212, %v205
      %v214 = vpop.permute.xlu0 %213
      %v216 = vmul.f32 %v202, %v209
      %v217 = vmul.f32 %v203, %v214
      %v218 = vld [vmem:[%s2] sm:$0xff]
      %v219 = vld [vmem:[%s2 + $0x8] sm:$0xff]
      %221 = vset.pattern.permute.xlu0 0
      %222 = vperm.xlu0 %221, %v218
      %v223 = vpop.permute.xlu0 %222
      %226 = vset.pattern.permute.xlu0 0
      %227 = vperm.xlu0 %226, %v219
      %v228 = vpop.permute.xlu0 %227
      %v230 = vadd.f32 %v216, %v223
      %v231 = vadd.f32 %v217, %v228
      %232 = vst [vmem:[%s201] sm:$0xff] %v230
      %233 = vst [vmem:[%s201 + $0x8] sm:$0xff] %v231
      %p234 = scmp.lt.s32.totalorder %s18, 1
      %s235 = scalar_select %p234, %s18, 1
      %p236 = scmp.lt.s32.totalorder %s19, 0
      %s237 = scalar_select %p236, %s19, 0
      %s238 = smul.addr %s235, 2
      %s239 = sadd.s32 %s237, %s238
      %s240 = smul.addr %s239, 8
      %s241 = scalar_lea.vmem %s3, %s240
      // Predicated region
      $region33: #{ublock_forward.3} parent=31 // pred_check
        %p242 = pneg %p116
      $region34: #{ublock_forward.3} parent=31 // pred_check_branch
        %244 = sbr.rel (%p242) target = $region36
      $region35: #{ublock_forward.3} parent=31 // pred_region
        _
      $region36: #{ublock_forward.3} parent=31 // pred_fallthru
        _
    $region32: #{ublock_forward.3} parent=5 // pred_fallthru
      _
    %p245 = scmp.le.s32.totalorder 2, %s9
    // Predicated region
    $region37: #{ublock_forward.3} parent=5 // pred_check
      %p246 = pneg %p245
    $region38: #{ublock_forward.3} parent=5 // pred_check_branch
      %248 = sbr.rel (%p246) target = $region40
    $region39: #{ublock_forward.3} parent=5 // pred_region
      %s249 = ssub.s32 %s9, 2
      // Predicated region
      $region41: #{ublock_forward.3} parent=39 // pred_check
        %p250 = pneg %p122
      $region42: #{ublock_forward.3} parent=39 // pred_check_branch
        %252 = sbr.rel (%p250) target = $region44
      $region43: #{ublock_forward.3} parent=39 // pred_region
        %p253 = scmp.lt.s32.totalorder %s20, 1
        %s254 = scalar_select %p253, %s20, 1
        %p255 = scmp.lt.s32.totalorder %s21, 0
        %s256 = scalar_select %p255, %s21, 0
        %s257 = smul.addr %s254, 2
        %s258 = sadd.s32 %s256, %s257
        %s259 = smul.addr %s258, 8
        %s260 = scalar_lea.vmem %s3, %s259
      $region44: #{ublock_forward.3} parent=39 // pred_fallthru
        _
    $region40: #{ublock_forward.3} parent=5 // pred_fallthru
      _
  $region6: #{ublock_forward.3} parent=0 // loop_footer
    %s13 = sadd.s32 1, %s9
  $region7: #{ublock_forward.3} parent=0 // loop_footer_branch
    %8 = sbr.rel target = $region3
  $region8: #{ublock_forward.3} parent=0 // loop_exit
    _

// kernel: ublock_forward.2
$region0: #{ublock_forward.2}
  #allocation0 [shape = 'u32[]', space=smem, size = 0x4, offset = 0x4, fixed_abs, tag = 'smem constant byte address 0x4 - core index']
  #allocation1 [shape = 'u32[72,128]{1,0:T(1,128)}', space=vmem, size = 0x9000, scoped, tag = 'internal scratch']
  %s0 = inlined_call_operand.vmem [shape: f32[2,12,128], index: 0, kind: input, shape index: {}]
  %s1 = inlined_call_operand.vmem [shape: f32[16,12], index: 1, kind: input, shape index: {}]
  %s2 = inlined_call_operand.vmem [shape: f32[8,12], index: 2, kind: input, shape index: {}]
  %s3 = inlined_call_operand.vmem [shape: f32[8,12], index: 3, kind: input, shape index: {}]
  %s4 = inlined_call_operand.vmem [shape: f32[16,8], index: 4, kind: input, shape index: {}]
  %s5 = inlined_call_operand.vmem [shape: f32[16,8], index: 5, kind: input, shape index: {}]
  %s6 = inlined_call_operand.vmem [shape: f32[8,8], index: 6, kind: input, shape index: {}]
  %s7 = inlined_call_operand.vmem [shape: f32[8,8], index: 7, kind: input, shape index: {}]
  %s8 = inlined_call_operand.vmem [shape: f32[8,8], index: 8, kind: input, shape index: {}]
  %s9 = inlined_call_operand.vmem [shape: f32[8,8], index: 9, kind: input, shape index: {}]
  %s10 = inlined_call_operand.vmem [shape: f32[8,1], index: 10, kind: input, shape index: {}]
  %s11 = inlined_call_operand.vmem [shape: f32[8,1], index: 11, kind: input, shape index: {}]
  %s12 = inlined_call_operand.vmem [shape: f32[8,1], index: 12, kind: input, shape index: {}]
  %s13 = inlined_call_operand.vmem [shape: f32[2,16,128], index: 13, kind: output, shape index: {0}]
  %s14 = inlined_call_operand.vmem [shape: f32[2,8,1], index: 14, kind: output, shape index: {1}]
  %s15 = inlined_call_operand.vmem [shape: f32[2,8,1], index: 15, kind: output, shape index: {2}]
  %16 = xla_tuple %s13, %s14, %s15
  %s17 = sld [smem:[#allocation0]]
  $region101: #{ublock_forward.2} parent=0
    _
  %s19 = ssub.s32 1, %s17
  %s20 = scalar_select 0, %s19, %s17
  loop: start=0, step=1, limit=4
  $region2: #{ublock_forward.2} parent=0 // loop_pre_header
    _
  $region3: #{ublock_forward.2} parent=0 // loop_header
    %s22 = sphi 0, %s26
    %p23 = scmp.ge.s32.totalorder %s22, 4
    %s32 = sphi 0, %s34
    %s35 = sphi 0, %s32
    %s36 = sphi 0, %s35
    %s52 = sphi 0, %s36
    %s56 = sphi 0, %s56
    %s58 = sphi 0, %s56
    %s59 = sphi 0, %s58
    %s73 = sphi 0, %s59
    %s77 = sphi 0, %s77
    %s79 = sphi 0, %s77
    %s80 = sphi 0, %s79
    %s94 = sphi 0, %s80
    %s98 = sphi 0, %s98
    %s100 = sphi 0, %s98
    %s101 = sphi 0, %s100
    %s115 = sphi 0, %s101
    %s119 = sphi 0, %s119
    %s121 = sphi 0, %s119
    %s122 = sphi 0, %s121
    %s136 = sphi 0, %s122
    %s140 = sphi 0, %s140
    %s142 = sphi 0, %s140
    %s143 = sphi 0, %s142
    %s157 = sphi 0, %s143
    %s161 = sphi 0, %s161
    %s163 = sphi 0, %s161
    %s164 = sphi 0, %s163
    %s178 = sphi 0, %s164
    %s182 = sphi 0, %s182
    %s184 = sphi 0, %s182
    %s185 = sphi 0, %s184
    %s199 = sphi 0, %s185
    %s203 = sphi 0, %s203
    %s205 = sphi 0, %s203
    %s206 = sphi 0, %s205
    %s220 = sphi 0, %s206
    %s224 = sphi 0, %s224
    %s226 = sphi 0, %s224
    %s227 = sphi 0, %s226
    %s241 = sphi 0, %s227
    %s245 = sphi 0, %s245
    %s247 = sphi 0, %s245
    %s248 = sphi 0, %s247
    %s262 = sphi 0, %s248
    %s266 = sphi 0, %s266
    %s268 = sphi 0, %s266
    %s269 = sphi 0, %s268
    %s283 = sphi 0, %s269
    %s287 = sphi 0, %s287
    %s289 = sphi 0, %s287
    %s290 = sphi 0, %s289
    %s304 = sphi 0, %s290
    %s310 = sphi 0, %s312
    %s313 = sphi 0, %s310
    %s314 = sphi 0, %s313
    %s330 = sphi 0, %s314
    %s336 = sphi 0, %s338
    %s339 = sphi 0, %s336
    %s340 = sphi 0, %s339
    %s356 = sphi 0, %s340
    %s362 = sphi 0, %s364
    %s365 = sphi 0, %s362
    %s366 = sphi 0, %s365
    %s382 = sphi 0, %s366
  $region4: #{ublock_forward.2} parent=0 // loop_header_branch
    %25 = sbr.rel (%p23) target = $region8
  $region5: #{ublock_forward.2} parent=0 // loop_body
    %s27 = ssub.s32 %s22, 1
    %s28 = ssub.s32 %s22, 2
    %s29 = sadd.s32 %s22, 1
    %s30 = ssub.s32 %s22, %s29
    %p31 = scmp.eq.s32.totalorder %s30, 0
    %s33 = sadd.s32 %s32, 1
    %s34 = scalar_select %p31, %s32, %s33
    %p37 = pneg %p31
    %p38 = scmp.eq.s32.totalorder %s22, 1
    %p39 = por %p37, %p38
    %p40 = scmp.ne.s32.totalorder %s32, %s35
    %p41 = scmp.eq.s32.totalorder %s22, 0
    %p42 = por %p40, %p41
    %p43 = scmp.ne.s32.totalorder %s32, %s35
    %p44 = scmp.eq.s32.totalorder %s27, 1
    %p45 = por %p43, %p44
    %p46 = scmp.ne.s32.totalorder %s35, %s36
    %p47 = scmp.eq.s32.totalorder %s27, 0
    %p48 = por %p46, %p47
    %p49 = scmp.ne.s32.totalorder %s35, %s36
    %p50 = scmp.eq.s32.totalorder %s28, 1
    %p51 = por %p49, %p50
    %p53 = scmp.ne.s32.totalorder %s36, %s52
    %p54 = scmp.eq.s32.totalorder %s28, 0
    %p55 = por %p53, %p54
    %s57 = sadd.s32 %s56, 1
    %p60 = scmp.eq.s32.totalorder %s22, 1
    %p61 = scmp.ne.s32.totalorder %s56, %s58
    %p62 = scmp.eq.s32.totalorder %s22, 0
    %p63 = por %p61, %p62
    %p64 = scmp.ne.s32.totalorder %s56, %s58
    %p65 = scmp.eq.s32.totalorder %s27, 1
    %p66 = por %p64, %p65
    %p67 = scmp.ne.s32.totalorder %s58, %s59
    %p68 = scmp.eq.s32.totalorder %s27, 0
    %p69 = por %p67, %p68
    %p70 = scmp.ne.s32.totalorder %s58, %s59
    %p71 = scmp.eq.s32.totalorder %s28, 1
    %p72 = por %p70, %p71
    %p74 = scmp.ne.s32.totalorder %s59, %s73
    %p75 = scmp.eq.s32.totalorder %s28, 0
    %p76 = por %p74, %p75
    %s78 = sadd.s32 %s77, 1
    %p81 = scmp.eq.s32.totalorder %s22, 1
    %p82 = scmp.ne.s32.totalorder %s77, %s79
    %p83 = scmp.eq.s32.totalorder %s22, 0
    %p84 = por %p82, %p83
    %p85 = scmp.ne.s32.totalorder %s77, %s79
    %p86 = scmp.eq.s32.totalorder %s27, 1
    %p87 = por %p85, %p86
    %p88 = scmp.ne.s32.totalorder %s79, %s80
    %p89 = scmp.eq.s32.totalorder %s27, 0
    %p90 = por %p88, %p89
    %p91 = scmp.ne.s32.totalorder %s79, %s80
    %p92 = scmp.eq.s32.totalorder %s28, 1
    %p93 = por %p91, %p92
    %p95 = scmp.ne.s32.totalorder %s80, %s94
    %p96 = scmp.eq.s32.totalorder %s28, 0
    %p97 = por %p95, %p96
    %s99 = sadd.s32 %s98, 1
    %p102 = scmp.eq.s32.totalorder %s22, 1
    %p103 = scmp.ne.s32.totalorder %s98, %s100
    %p104 = scmp.eq.s32.totalorder %s22, 0
    %p105 = por %p103, %p104
    %p106 = scmp.ne.s32.totalorder %s98, %s100
    %p107 = scmp.eq.s32.totalorder %s27, 1
    %p108 = por %p106, %p107
    %p109 = scmp.ne.s32.totalorder %s100, %s101
    %p110 = scmp.eq.s32.totalorder %s27, 0
    %p111 = por %p109, %p110
    %p112 = scmp.ne.s32.totalorder %s100, %s101
    %p113 = scmp.eq.s32.totalorder %s28, 1
    %p114 = por %p112, %p113
    %p116 = scmp.ne.s32.totalorder %s101, %s115
    %p117 = scmp.eq.s32.totalorder %s28, 0
    %p118 = por %p116, %p117
    %s120 = sadd.s32 %s119, 1
    %p123 = scmp.eq.s32.totalorder %s22, 1
    %p124 = scmp.ne.s32.totalorder %s119, %s121
    %p125 = scmp.eq.s32.totalorder %s22, 0
    %p126 = por %p124, %p125
    %p127 = scmp.ne.s32.totalorder %s119, %s121
    %p128 = scmp.eq.s32.totalorder %s27, 1
    %p129 = por %p127, %p128
    %p130 = scmp.ne.s32.totalorder %s121, %s122
    %p131 = scmp.eq.s32.totalorder %s27, 0
    %p132 = por %p130, %p131
    %p133 = scmp.ne.s32.totalorder %s121, %s122
    %p134 = scmp.eq.s32.totalorder %s28, 1
    %p135 = por %p133, %p134
    %p137 = scmp.ne.s32.totalorder %s122, %s136
    %p138 = scmp.eq.s32.totalorder %s28, 0
    %p139 = por %p137, %p138
    %s141 = sadd.s32 %s140, 1
    %p144 = scmp.eq.s32.totalorder %s22, 1
    %p145 = scmp.ne.s32.totalorder %s140, %s142
    %p146 = scmp.eq.s32.totalorder %s22, 0
    %p147 = por %p145, %p146
    %p148 = scmp.ne.s32.totalorder %s140, %s142
    %p149 = scmp.eq.s32.totalorder %s27, 1
    %p150 = por %p148, %p149
    %p151 = scmp.ne.s32.totalorder %s142, %s143
    %p152 = scmp.eq.s32.totalorder %s27, 0
    %p153 = por %p151, %p152
    %p154 = scmp.ne.s32.totalorder %s142, %s143
    %p155 = scmp.eq.s32.totalorder %s28, 1
    %p156 = por %p154, %p155
    %p158 = scmp.ne.s32.totalorder %s143, %s157
    %p159 = scmp.eq.s32.totalorder %s28, 0
    %p160 = por %p158, %p159
    %s162 = sadd.s32 %s161, 1
    %p165 = scmp.eq.s32.totalorder %s22, 1
    %p166 = scmp.ne.s32.totalorder %s161, %s163
    %p167 = scmp.eq.s32.totalorder %s22, 0
    %p168 = por %p166, %p167
    %p169 = scmp.ne.s32.totalorder %s161, %s163
    %p170 = scmp.eq.s32.totalorder %s27, 1
    %p171 = por %p169, %p170
    %p172 = scmp.ne.s32.totalorder %s163, %s164
    %p173 = scmp.eq.s32.totalorder %s27, 0
    %p174 = por %p172, %p173
    %p175 = scmp.ne.s32.totalorder %s163, %s164
    %p176 = scmp.eq.s32.totalorder %s28, 1
    %p177 = por %p175, %p176
    %p179 = scmp.ne.s32.totalorder %s164, %s178
    %p180 = scmp.eq.s32.totalorder %s28, 0
    %p181 = por %p179, %p180
    %s183 = sadd.s32 %s182, 1
    %p186 = scmp.eq.s32.totalorder %s22, 1
    %p187 = scmp.ne.s32.totalorder %s182, %s184
    %p188 = scmp.eq.s32.totalorder %s22, 0
    %p189 = por %p187, %p188
    %p190 = scmp.ne.s32.totalorder %s182, %s184
    %p191 = scmp.eq.s32.totalorder %s27, 1
    %p192 = por %p190, %p191
    %p193 = scmp.ne.s32.totalorder %s184, %s185
    %p194 = scmp.eq.s32.totalorder %s27, 0
    %p195 = por %p193, %p194
    %p196 = scmp.ne.s32.totalorder %s184, %s185
    %p197 = scmp.eq.s32.totalorder %s28, 1
    %p198 = por %p196, %p197
    %p200 = scmp.ne.s32.totalorder %s185, %s199
    %p201 = scmp.eq.s32.totalorder %s28, 0
    %p202 = por %p200, %p201
    %s204 = sadd.s32 %s203, 1
    %p207 = scmp.eq.s32.totalorder %s22, 1
    %p208 = scmp.ne.s32.totalorder %s203, %s205
    %p209 = scmp.eq.s32.totalorder %s22, 0
    %p210 = por %p208, %p209
    %p211 = scmp.ne.s32.totalorder %s203, %s205
    %p212 = scmp.eq.s32.totalorder %s27, 1
    %p213 = por %p211, %p212
    %p214 = scmp.ne.s32.totalorder %s205, %s206
    %p215 = scmp.eq.s32.totalorder %s27, 0
    %p216 = por %p214, %p215
    %p217 = scmp.ne.s32.totalorder %s205, %s206
    %p218 = scmp.eq.s32.totalorder %s28, 1
    %p219 = por %p217, %p218
    %p221 = scmp.ne.s32.totalorder %s206, %s220
    %p222 = scmp.eq.s32.totalorder %s28, 0
    %p223 = por %p221, %p222
    %s225 = sadd.s32 %s224, 1
    %p228 = scmp.eq.s32.totalorder %s22, 1
    %p229 = scmp.ne.s32.totalorder %s224, %s226
    %p230 = scmp.eq.s32.totalorder %s22, 0
    %p231 = por %p229, %p230
    %p232 = scmp.ne.s32.totalorder %s224, %s226
    %p233 = scmp.eq.s32.totalorder %s27, 1
    %p234 = por %p232, %p233
    %p235 = scmp.ne.s32.totalorder %s226, %s227
    %p236 = scmp.eq.s32.totalorder %s27, 0
    %p237 = por %p235, %p236
    %p238 = scmp.ne.s32.totalorder %s226, %s227
    %p239 = scmp.eq.s32.totalorder %s28, 1
    %p240 = por %p238, %p239
    %p242 = scmp.ne.s32.totalorder %s227, %s241
    %p243 = scmp.eq.s32.totalorder %s28, 0
    %p244 = por %p242, %p243
    %s246 = sadd.s32 %s245, 1
    %p249 = scmp.eq.s32.totalorder %s22, 1
    %p250 = scmp.ne.s32.totalorder %s245, %s247
    %p251 = scmp.eq.s32.totalorder %s22, 0
    %p252 = por %p250, %p251
    %p253 = scmp.ne.s32.totalorder %s245, %s247
    %p254 = scmp.eq.s32.totalorder %s27, 1
    %p255 = por %p253, %p254
    %p256 = scmp.ne.s32.totalorder %s247, %s248
    %p257 = scmp.eq.s32.totalorder %s27, 0
    %p258 = por %p256, %p257
    %p259 = scmp.ne.s32.totalorder %s247, %s248
    %p260 = scmp.eq.s32.totalorder %s28, 1
    %p261 = por %p259, %p260
    %p263 = scmp.ne.s32.totalorder %s248, %s262
    %p264 = scmp.eq.s32.totalorder %s28, 0
    %p265 = por %p263, %p264
    %s267 = sadd.s32 %s266, 1
    %p270 = scmp.eq.s32.totalorder %s22, 1
    %p271 = scmp.ne.s32.totalorder %s266, %s268
    %p272 = scmp.eq.s32.totalorder %s22, 0
    %p273 = por %p271, %p272
    %p274 = scmp.ne.s32.totalorder %s266, %s268
    %p275 = scmp.eq.s32.totalorder %s27, 1
    %p276 = por %p274, %p275
    %p277 = scmp.ne.s32.totalorder %s268, %s269
    %p278 = scmp.eq.s32.totalorder %s27, 0
    %p279 = por %p277, %p278
    %p280 = scmp.ne.s32.totalorder %s268, %s269
    %p281 = scmp.eq.s32.totalorder %s28, 1
    %p282 = por %p280, %p281
    %p284 = scmp.ne.s32.totalorder %s269, %s283
    %p285 = scmp.eq.s32.totalorder %s28, 0
    %p286 = por %p284, %p285
    %s288 = sadd.s32 %s287, 1
    %p291 = scmp.eq.s32.totalorder %s22, 1
    %p292 = scmp.ne.s32.totalorder %s287, %s289
    %p293 = scmp.eq.s32.totalorder %s22, 0
    %p294 = por %p292, %p293
    %p295 = scmp.ne.s32.totalorder %s287, %s289
    %p296 = scmp.eq.s32.totalorder %s27, 1
    %p297 = por %p295, %p296
    %p298 = scmp.ne.s32.totalorder %s289, %s290
    %p299 = scmp.eq.s32.totalorder %s27, 0
    %p300 = por %p298, %p299
    %p301 = scmp.ne.s32.totalorder %s289, %s290
    %p302 = scmp.eq.s32.totalorder %s28, 1
    %p303 = por %p301, %p302
    %p305 = scmp.ne.s32.totalorder %s290, %s304
    %p306 = scmp.eq.s32.totalorder %s28, 0
    %p307 = por %p305, %p306
    %s308 = ssub.s32 %s22, %s29
    %p309 = scmp.eq.s32.totalorder %s308, 0
    %s311 = sadd.s32 %s310, 1
    %s312 = scalar_select %p309, %s310, %s311
    %p315 = pneg %p309
    %p316 = scmp.eq.s32.totalorder %s22, 1
    %p317 = por %p315, %p316
    %p318 = scmp.ne.s32.totalorder %s310, %s313
    %p319 = scmp.eq.s32.totalorder %s22, 0
    %p320 = por %p318, %p319
    %p321 = scmp.ne.s32.totalorder %s310, %s313
    %p322 = scmp.eq.s32.totalorder %s27, 1
    %p323 = por %p321, %p322
    %p324 = scmp.ne.s32.totalorder %s313, %s314
    %p325 = scmp.eq.s32.totalorder %s27, 0
    %p326 = por %p324, %p325
    %p327 = scmp.ne.s32.totalorder %s313, %s314
    %p328 = scmp.eq.s32.totalorder %s28, 1
    %p329 = por %p327, %p328
    %p331 = scmp.ne.s32.totalorder %s314, %s330
    %p332 = scmp.eq.s32.totalorder %s28, 0
    %p333 = por %p331, %p332
    %s334 = ssub.s32 %s22, %s29
    %p335 = scmp.eq.s32.totalorder %s334, 0
    %s337 = sadd.s32 %s336, 1
    %s338 = scalar_select %p335, %s336, %s337
    %p341 = pneg %p335
    %p342 = scmp.eq.s32.totalorder %s22, 1
    %p343 = por %p341, %p342
    %p344 = scmp.ne.s32.totalorder %s336, %s339
    %p345 = scmp.eq.s32.totalorder %s22, 0
    %p346 = por %p344, %p345
    %p347 = scmp.ne.s32.totalorder %s336, %s339
    %p348 = scmp.eq.s32.totalorder %s27, 1
    %p349 = por %p347, %p348
    %p350 = scmp.ne.s32.totalorder %s339, %s340
    %p351 = scmp.eq.s32.totalorder %s27, 0
    %p352 = por %p350, %p351
    %p353 = scmp.ne.s32.totalorder %s339, %s340
    %p354 = scmp.eq.s32.totalorder %s28, 1
    %p355 = por %p353, %p354
    %p357 = scmp.ne.s32.totalorder %s340, %s356
    %p358 = scmp.eq.s32.totalorder %s28, 0
    %p359 = por %p357, %p358
    %s360 = ssub.s32 %s22, %s29
    %p361 = scmp.eq.s32.totalorder %s360, 0
    %s363 = sadd.s32 %s362, 1
    %s364 = scalar_select %p361, %s362, %s363
    %p367 = pneg %p361
    %p368 = scmp.eq.s32.totalorder %s22, 1
    %p369 = por %p367, %p368
    %p370 = scmp.ne.s32.totalorder %s362, %s365
    %p371 = scmp.eq.s32.totalorder %s22, 0
    %p372 = por %p370, %p371
    %p373 = scmp.ne.s32.totalorder %s362, %s365
    %p374 = scmp.eq.s32.totalorder %s27, 1
    %p375 = por %p373, %p374
    %p376 = scmp.ne.s32.totalorder %s365, %s366
    %p377 = scmp.eq.s32.totalorder %s27, 0
    %p378 = por %p376, %p377
    %p379 = scmp.ne.s32.totalorder %s365, %s366
    %p380 = scmp.eq.s32.totalorder %s28, 1
    %p381 = por %p379, %p380
    %p383 = scmp.ne.s32.totalorder %s366, %s382
    %p384 = scmp.eq.s32.totalorder %s28, 0
    %p385 = por %p383, %p384
    %p386 = scmp.le.s32.totalorder 1, %s22
    %p387 = scmp.lt.s32.totalorder %s22, 3
    %p388 = pnand %p386, %p387
    %p389 = pneg %p388
    // Predicated region
    $region9: #{ublock_forward.2} parent=5 // pred_check
      _
    $region10: #{ublock_forward.2} parent=5 // pred_check_branch
      %391 = sbr.rel (%p388) target = $region12
    $region11: #{ublock_forward.2} parent=5 // pred_region
      %s392 = ssub.s32 %s22, 1
      // Predicated region
      $region13: #{ublock_forward.2} parent=11 // pred_check
        %p393 = pneg %p69
      $region14: #{ublock_forward.2} parent=11 // pred_check_branch
        %395 = sbr.rel (%p393) target = $region16
      $region15: #{ublock_forward.2} parent=11 // pred_region
        _
      $region16: #{ublock_forward.2} parent=11 // pred_fallthru
        _
      // Predicated region
      $region17: #{ublock_forward.2} parent=11 // pred_check
        %p396 = pneg %p90
      $region18: #{ublock_forward.2} parent=11 // pred_check_branch
        %398 = sbr.rel (%p396) target = $region20
      $region19: #{ublock_forward.2} parent=11 // pred_region
        _
      $region20: #{ublock_forward.2} parent=11 // pred_fallthru
        _
      // Predicated region
      $region21: #{ublock_forward.2} parent=11 // pred_check
        %p399 = pneg %p111
      $region22: #{ublock_forward.2} parent=11 // pred_check_branch
        %401 = sbr.rel (%p399) target = $region24
      $region23: #{ublock_forward.2} parent=11 // pred_region
        _
      $region24: #{ublock_forward.2} parent=11 // pred_fallthru
        _
      // Predicated region
      $region25: #{ublock_forward.2} parent=11 // pred_check
        %p402 = pneg %p132
      $region26: #{ublock_forward.2} parent=11 // pred_check_branch
        %404 = sbr.rel (%p402) target = $region28
      $region27: #{ublock_forward.2} parent=11 // pred_region
        _
      $region28: #{ublock_forward.2} parent=11 // pred_fallthru
        _
      // Predicated region
      $region29: #{ublock_forward.2} parent=11 // pred_check
        %p405 = pneg %p153
      $region30: #{ublock_forward.2} parent=11 // pred_check_branch
        %407 = sbr.rel (%p405) target = $region32
      $region31: #{ublock_forward.2} parent=11 // pred_region
        _
      $region32: #{ublock_forward.2} parent=11 // pred_fallthru
        _
      // Predicated region
      $region33: #{ublock_forward.2} parent=11 // pred_check
        %p408 = pneg %p174
      $region34: #{ublock_forward.2} parent=11 // pred_check_branch
        %410 = sbr.rel (%p408) target = $region36
      $region35: #{ublock_forward.2} parent=11 // pred_region
        _
      $region36: #{ublock_forward.2} parent=11 // pred_fallthru
        _
      // Predicated region
      $region37: #{ublock_forward.2} parent=11 // pred_check
        %p411 = pneg %p195
      $region38: #{ublock_forward.2} parent=11 // pred_check_branch
        %413 = sbr.rel (%p411) target = $region40
      $region39: #{ublock_forward.2} parent=11 // pred_region
        _
      $region40: #{ublock_forward.2} parent=11 // pred_fallthru
        _
      // Predicated region
      $region41: #{ublock_forward.2} parent=11 // pred_check
        %p414 = pneg %p216
      $region42: #{ublock_forward.2} parent=11 // pred_check_branch
        %416 = sbr.rel (%p414) target = $region44
      $region43: #{ublock_forward.2} parent=11 // pred_region
        _
      $region44: #{ublock_forward.2} parent=11 // pred_fallthru
        _
      // Predicated region
      $region45: #{ublock_forward.2} parent=11 // pred_check
        %p417 = pneg %p237
      $region46: #{ublock_forward.2} parent=11 // pred_check_branch
        %419 = sbr.rel (%p417) target = $region48
      $region47: #{ublock_forward.2} parent=11 // pred_region
        _
      $region48: #{ublock_forward.2} parent=11 // pred_fallthru
        _
      // Predicated region
      $region49: #{ublock_forward.2} parent=11 // pred_check
        %p420 = pneg %p258
      $region50: #{ublock_forward.2} parent=11 // pred_check_branch
        %422 = sbr.rel (%p420) target = $region52
      $region51: #{ublock_forward.2} parent=11 // pred_region
        _
      $region52: #{ublock_forward.2} parent=11 // pred_fallthru
        _
      // Predicated region
      $region53: #{ublock_forward.2} parent=11 // pred_check
        %p423 = pneg %p279
      $region54: #{ublock_forward.2} parent=11 // pred_check_branch
        %425 = sbr.rel (%p423) target = $region56
      $region55: #{ublock_forward.2} parent=11 // pred_region
        _
      $region56: #{ublock_forward.2} parent=11 // pred_fallthru
        _
      // Predicated region
      $region57: #{ublock_forward.2} parent=11 // pred_check
        %p426 = pneg %p300
      $region58: #{ublock_forward.2} parent=11 // pred_check_branch
        %428 = sbr.rel (%p426) target = $region60
      $region59: #{ublock_forward.2} parent=11 // pred_region
        _
      $region60: #{ublock_forward.2} parent=11 // pred_fallthru
        _
    $region12: #{ublock_forward.2} parent=5 // pred_fallthru
      _
    %p429 = scmp.lt.s32.totalorder %s22, 2
    // Predicated region
    $region61: #{ublock_forward.2} parent=5 // pred_check
      %p430 = pneg %p429
    $region62: #{ublock_forward.2} parent=5 // pred_check_branch
      %432 = sbr.rel (%p430) target = $region64
    $region63: #{ublock_forward.2} parent=5 // pred_region
      // Predicated region
      $region65: #{ublock_forward.2} parent=63 // pred_check
        %p433 = pneg %p42
      $region66: #{ublock_forward.2} parent=63 // pred_check_branch
        %435 = sbr.rel (%p433) target = $region68
      $region67: #{ublock_forward.2} parent=63 // pred_region
        %p436 = scmp.lt.s32.totalorder %s22, 1
        %s437 = scalar_select %p436, %s22, 1
        %s438 = smul.addr %s437, 2
        %s439 = smul.addr %s438, 8
        %s440 = scalar_lea.vmem %s0, %s439
      $region68: #{ublock_forward.2} parent=63 // pred_fallthru
        _
    $region64: #{ublock_forward.2} parent=5 // pred_fallthru
      _
    %p441 = scmp.le.s32.totalorder 1, %s22
    %p442 = scmp.lt.s32.totalorder %s22, 3
    %p443 = pnand %p441, %p442
    %p444 = pneg %p443
    // Predicated region
    $region69: #{ublock_forward.2} parent=5 // pred_check
      _
    $region70: #{ublock_forward.2} parent=5 // pred_check_branch
      %446 = sbr.rel (%p443) target = $region72
    $region71: #{ublock_forward.2} parent=5 // pred_region
      %s447 = ssub.s32 %s22, 1
      %p448 = scmp.lt.s32.totalorder %s27, 1
      %s449 = scalar_select %p448, %s27, 1
      %s450 = smul.addr %s449, 2
      %s451 = smul.addr %s450, 8
      %s452 = scalar_lea.vmem %s0, %s451
      %p453 = pneg %p48
      %p454 = pneg %p45
      %p455 = pneg %p69
      %p456 = pneg %p66
      %p457 = pneg %p90
      %p458 = pneg %p87
      %p459 = pneg %p111
      %p460 = pneg %p108
      %p461 = pneg %p132
      %p462 = pneg %p129
      %p463 = pneg %p153
      %p464 = pneg %p150
      %p465 = pneg %p174
      %p466 = pneg %p171
      %p467 = pneg %p195
      %p468 = pneg %p192
      %p469 = pneg %p216
      %p470 = pneg %p213
      %p471 = pneg %p237
      %p472 = pneg %p234
      %p473 = pneg %p258
      %p474 = pneg %p255
      %p475 = pneg %p279
      %p476 = pneg %p276
      %p477 = pneg %p300
      %p478 = pneg %p297
      %p479 = pneg %p326
      %p480 = pneg %p323
      %p481 = scmp.lt.s32.totalorder %s27, 1
      %s482 = scalar_select %p481, %s27, 1
      %s483 = smul.addr %s482, 2
      %s484 = smul.addr %s483, 8
      %s485 = scalar_lea.vmem %s13, %s484
      %p486 = pneg %p352
      %p487 = pneg %p349
      %p488 = scmp.lt.s32.totalorder %s27, 1
      %s489 = scalar_select %p488, %s27, 1
      %s490 = smul.addr %s489, 8
      %s491 = scalar_lea.vmem %s14, %s490
      %p492 = pneg %p378
      %p493 = pneg %p375
      %p494 = scmp.lt.s32.totalorder %s27, 1
      %s495 = scalar_select %p494, %s27, 1
      %s496 = smul.addr %s495, 8
      %s497 = scalar_lea.vmem %s15, %s496
      %p498 = scmp.lt.s32.totalorder %s27, 1
      %s499 = scalar_select %p498, %s27, 1
      %s500 = smul.addr %s499, 2
      %s501 = smul.addr %s500, 8
      %s502 = scalar_lea.vmem %s0, %s501
      %p503 = scmp.lt.s32.totalorder %s27, 1
      %s504 = scalar_select %p503, %s27, 1
      %s505 = smul.addr %s504, 2
      %s506 = smul.addr %s505, 8
      %s507 = scalar_lea.vmem %s13, %s506
      %p508 = scmp.lt.s32.totalorder %s27, 1
      %s509 = scalar_select %p508, %s27, 1
      %s510 = smul.addr %s509, 8
      %s511 = scalar_lea.vmem %s14, %s510
      %p512 = scmp.lt.s32.totalorder %s27, 1
      %s513 = scalar_select %p512, %s27, 1
      %s514 = smul.addr %s513, 8
      %s515 = scalar_lea.vmem %s15, %s514
      %v516 = vld [vmem:[%s502] sm:$0xff]
      %v517 = vld [vmem:[%s502 + $0x8] sm:$0xf]
      %v518 = vlaneseq
      %v519 = vand.u32 %v518, 127
      %vm520 = vcmp.eq.s32.totalorder %v519, 0
      %521 = vrot.lane.b32.xlu0 %v516, 1
      %v522 = vpop.permute.xlu0 %521
      %523 = vrot.lane.b32.xlu0 %v517, 1
      %v524 = vpop.permute.xlu0 %523
      %v525 = vsel %vm520, 0.0, %v522
      %v526 = vsel %vm520, 0.0, %v524
      %vm527 = vcmp.eq.s32.totalorder %v519, 127
      %528 = vrot.lane.b32.xlu0 %v516, 127
      %v529 = vpop.permute.xlu0 %528
      %530 = vrot.lane.b32.xlu0 %v517, 127
      %v531 = vpop.permute.xlu0 %530
      %v532 = vsel %vm527, 0.0, %v529
      %v533 = vsel %vm527, 0.0, %v531
      %v534 = vld [vmem:[%s10] sm:$0xff]
      %v535 = vld [vmem:[%s1] sm:$0xff]
      %v536 = vld [vmem:[%s1 + $0x8] sm:$0xff]
      %vm537 = vcmask 97280
      %v539 = vsel %vm537, %v535, 0
      %v542 = vsel %vm537, %v536, 0
      %vm544 = vcmask 1043456
      %v546 = vsel %vm544, %v517, 0
      %548 = vmatpush.msra.mxu0 0.0
      %549 = vmatpush.msra.mxu0 0.0
      %550 = vmatpush.msra.mxu0 0.0
      %551 = vmatpush.msra.mxu0 0.0
      %552 = vmatpush.msra.mxu0 0.0
      %553 = vmatpush.msra.mxu0 0.0
      %554 = vmatpush.msra.mxu0 0.0
      %555 = vmatpush.msra.mxu0 0.0
      %556 = vmatpush.msra.mxu0 0.0
      %557 = vmatpush.msra.mxu0 0.0
      %558 = vmatpush.msra.mxu0 0.0
      %559 = vmatpush.msra.mxu0 0.0
      %560 = vmatpush.msra.mxu0 0.0
      %561 = vmatpush.msra.mxu0 0.0
      %562 = vmatpush.msra.mxu0 %v546
      %563 = vmatpush.msra.mxu0 %v516
      %564 = vmatmul.f32.gmra.mxu0 %v539
      %v565 = vpop.f32.mrf.mxu0
      %v566 = vadd.f32 0.0, %v565
      %567 = vmatmul.f32.gmra.mxu0 %v542
      %v568 = vpop.f32.mrf.mxu0
      %v569 = vadd.f32 0.0, %v568
      %570 = vdwg.mxu0
      %v571 = vld [vmem:[%s2] sm:$0xff]
      %v573 = vsel %vm537, %v571, 0
      %v576 = vsel %vm544, %v526, 0
      %578 = vmatpush.msra.mxu0 0.0
      %579 = vmatpush.msra.mxu0 0.0
      %580 = vmatpush.msra.mxu0 0.0
      %581 = vmatpush.msra.mxu0 0.0
      %582 = vmatpush.msra.mxu0 0.0
      %583 = vmatpush.msra.mxu0 0.0
      %584 = vmatpush.msra.mxu0 0.0
      %585 = vmatpush.msra.mxu0 0.0
      %586 = vmatpush.msra.mxu0 0.0
      %587 = vmatpush.msra.mxu0 0.0
      %588 = vmatpush.msra.mxu0 0.0
      %589 = vmatpush.msra.mxu0 0.0
      %590 = vmatpush.msra.mxu0 0.0
      %591 = vmatpush.msra.mxu0 0.0
      %592 = vmatpush.msra.mxu0 %v576
      %593 = vmatpush.msra.mxu0 %v525
      %594 = vmatmul.f32.gmra.mxu0 %v573
      %v595 = vpop.f32.mrf.mxu0
      %v596 = vadd.f32 0.0, %v595
      %597 = vdwg.mxu0
      %v598 = vadd.f32 %v566, %v596
      %600 = vset.pattern.permute.xlu0 0
      %601 = vperm.xlu0 %600, %v534
      %v602 = vpop.permute.xlu0 %601
      %v604 = vadd.f32 %v598, %v602
      %v605 = vld [vmem:[%s3] sm:$0xff]
      %v607 = vsel %vm537, %v605, 0
      %v610 = vsel %vm544, %v533, 0
      %612 = vmatpush.msra.mxu0 0.0
      %613 = vmatpush.msra.mxu0 0.0
      %614 = vmatpush.msra.mxu0 0.0
      %615 = vmatpush.msra.mxu0 0.0
      %616 = vmatpush.msra.mxu0 0.0
      %617 = vmatpush.msra.mxu0 0.0
      %618 = vmatpush.msra.mxu0 0.0
      %619 = vmatpush.msra.mxu0 0.0
      %620 = vmatpush.msra.mxu0 0.0
      %621 = vmatpush.msra.mxu0 0.0
      %622 = vmatpush.msra.mxu0 0.0
      %623 = vmatpush.msra.mxu0 0.0
      %624 = vmatpush.msra.mxu0 0.0
      %625 = vmatpush.msra.mxu0 0.0
      %626 = vmatpush.msra.mxu0 %v610
      %627 = vmatpush.msra.mxu0 %v532
      %628 = vmatmul.f32.gmra.mxu0 %v607
      %v629 = vpop.f32.mrf.mxu0
      %v630 = vadd.f32 0.0, %v629
      %631 = vdwg.mxu0
      %v632 = vadd.f32 %v569, %v630
      %v633 = vadd.f32 %v632, %v602
      %vm634 = vcmp.gt.f32.partialorder %v604, 0.0
      %v635 = vmul.f32 %v604, 0.01
      %v636 = vsel %vm634, %v604, %v635
      %vm637 = vcmp.gt.f32.partialorder %v633, 0.0
      %v638 = vmul.f32 %v633, 0.01
      %v639 = vsel %vm637, %v633, %v638
      %v640 = vld [vmem:[%s11] sm:$0xff]
      %v641 = vld [vmem:[%s4] sm:$0xff]
      %v642 = vld [vmem:[%s4 + $0x8] sm:$0xff]
      %vm643 = vcmask 64512
      %v645 = vsel %vm643, %v641, 0
      %v648 = vsel %vm643, %v642, 0
      %650 = vmatpush.msra.mxu0 0.0
      %651 = vmatpush.msra.mxu0 0.0
      %652 = vmatpush.msra.mxu0 0.0
      %653 = vmatpush.msra.mxu0 0.0
      %654 = vmatpush.msra.mxu0 0.0
      %655 = vmatpush.msra.mxu0 0.0
      %656 = vmatpush.msra.mxu0 0.0
      %657 = vmatpush.msra.mxu0 0.0
      %658 = vmatpush.msra.mxu0 0.0
      %659 = vmatpush.msra.mxu0 0.0
      %660 = vmatpush.msra.mxu0 0.0
      %661 = vmatpush.msra.mxu0 0.0
      %662 = vmatpush.msra.mxu0 0.0
      %663 = vmatpush.msra.mxu0 0.0
      %664 = vmatpush.msra.mxu0 0.0
      %665 = vmatpush.msra.mxu0 %v636
      %666 = vmatmul.f32.gmra.mxu0 %v645
      %v667 = vpop.f32.mrf.mxu0
      %v668 = vadd.f32 0.0, %v667
      %669 = vmatmul.f32.gmra.mxu0 %v648
      %v670 = vpop.f32.mrf.mxu0
      %v671 = vadd.f32 0.0, %v670
      %672 = vdwg.mxu0
      %v673 = vld [vmem:[%s5] sm:$0xff]
      %v674 = vld [vmem:[%s5 + $0x8] sm:$0xff]
      %v676 = vsel %vm643, %v673, 0
      %v679 = vsel %vm643, %v674, 0
      %681 = vmatpush.msra.mxu0 0.0
      %682 = vmatpush.msra.mxu0 0.0
      %683 = vmatpush.msra.mxu0 0.0
      %684 = vmatpush.msra.mxu0 0.0
      %685 = vmatpush.msra.mxu0 0.0
      %686 = vmatpush.msra.mxu0 0.0
      %687 = vmatpush.msra.mxu0 0.0
      %688 = vmatpush.msra.mxu0 0.0
      %689 = vmatpush.msra.mxu0 0.0
      %690 = vmatpush.msra.mxu0 0.0
      %691 = vmatpush.msra.mxu0 0.0
      %692 = vmatpush.msra.mxu0 0.0
      %693 = vmatpush.msra.mxu0 0.0
      %694 = vmatpush.msra.mxu0 0.0
      %695 = vmatpush.msra.mxu0 0.0
      %696 = vmatpush.msra.mxu0 %v639
      %697 = vmatmul.f32.gmra.mxu0 %v676
      %v698 = vpop.f32.mrf.mxu0
      %v699 = vadd.f32 0.0, %v698
      %700 = vmatmul.f32.gmra.mxu0 %v679
      %v701 = vpop.f32.mrf.mxu0
      %v702 = vadd.f32 0.0, %v701
      %703 = vdwg.mxu0
      %v704 = vadd.f32 %v668, %v699
      %v705 = vld [vmem:[%s6] sm:$0xff]
      %706 = vrot.lane.b32.xlu0 %v639, 1
      %v707 = vpop.permute.xlu0 %706
      %v708 = vsel %vm520, 0.0, %v707
      %v710 = vsel %vm643, %v705, 0
      %712 = vmatpush.msra.mxu0 0.0
      %713 = vmatpush.msra.mxu0 0.0
      %714 = vmatpush.msra.mxu0 0.0
      %715 = vmatpush.msra.mxu0 0.0
      %716 = vmatpush.msra.mxu0 0.0
      %717 = vmatpush.msra.mxu0 0.0
      %718 = vmatpush.msra.mxu0 0.0
      %719 = vmatpush.msra.mxu0 0.0
      %720 = vmatpush.msra.mxu0 0.0
      %721 = vmatpush.msra.mxu0 0.0
      %722 = vmatpush.msra.mxu0 0.0
      %723 = vmatpush.msra.mxu0 0.0
      %724 = vmatpush.msra.mxu0 0.0
      %725 = vmatpush.msra.mxu0 0.0
      %726 = vmatpush.msra.mxu0 0.0
      %727 = vmatpush.msra.mxu0 %v708
      %728 = vmatmul.f32.gmra.mxu0 %v710
      %v729 = vpop.f32.mrf.mxu0
      %v730 = vadd.f32 0.0, %v729
      %731 = vdwg.mxu0
      %v732 = vadd.f32 %v704, %v730
      %734 = vset.pattern.permute.xlu0 0
      %735 = vperm.xlu0 %734, %v640
      %v736 = vpop.permute.xlu0 %735
      %v738 = vadd.f32 %v732, %v736
      %v739 = vadd.f32 %v671, %v702
      %v740 = vld [vmem:[%s7] sm:$0xff]
      %741 = vrot.lane.b32.xlu0 %v636, 127
      %v742 = vpop.permute.xlu0 %741
      %v743 = vsel %vm527, 0.0, %v742
      %v745 = vsel %vm643, %v740, 0
      %747 = vmatpush.msra.mxu0 0.0
      %748 = vmatpush.msra.mxu0 0.0
      %749 = vmatpush.msra.mxu0 0.0
      %750 = vmatpush.msra.mxu0 0.0
      %751 = vmatpush.msra.mxu0 0.0
      %752 = vmatpush.msra.mxu0 0.0
      %753 = vmatpush.msra.mxu0 0.0
      %754 = vmatpush.msra.mxu0 0.0
      %755 = vmatpush.msra.mxu0 0.0
      %756 = vmatpush.msra.mxu0 0.0
      %757 = vmatpush.msra.mxu0 0.0
      %758 = vmatpush.msra.mxu0 0.0
      %759 = vmatpush.msra.mxu0 0.0
      %760 = vmatpush.msra.mxu0 0.0
      %761 = vmatpush.msra.mxu0 0.0
      %762 = vmatpush.msra.mxu0 %v743
      %763 = vmatmul.f32.gmra.mxu0 %v745
      %v764 = vpop.f32.mrf.mxu0
      %v765 = vadd.f32 0.0, %v764
      %766 = vdwg.mxu0
      %v767 = vadd.f32 %v739, %v765
      %v768 = vadd.f32 %v767, %v736
      %vm769 = vcmp.gt.f32.partialorder %v738, 0.0
      %v770 = vmul.f32 %v738, 0.01
      %v771 = vsel %vm769, %v738, %v770
      %vm772 = vcmp.gt.f32.partialorder %v768, 0.0
      %v773 = vmul.f32 %v768, 0.01
      %v774 = vsel %vm772, %v768, %v773
      %v775 = vld [vmem:[%s12] sm:$0xff]
      %v776 = vld [vmem:[%s8] sm:$0xff]
      %v777 = vld [vmem:[%s9] sm:$0xff]
      %v779 = vsel %vm643, %v777, 0
      %781 = vmatpush.msra.mxu0 0.0
      %782 = vmatpush.msra.mxu0 0.0
      %783 = vmatpush.msra.mxu0 0.0
      %784 = vmatpush.msra.mxu0 0.0
      %785 = vmatpush.msra.mxu0 0.0
      %786 = vmatpush.msra.mxu0 0.0
      %787 = vmatpush.msra.mxu0 0.0
      %788 = vmatpush.msra.mxu0 0.0
      %789 = vmatpush.msra.mxu0 0.0
      %790 = vmatpush.msra.mxu0 0.0
      %791 = vmatpush.msra.mxu0 0.0
      %792 = vmatpush.msra.mxu0 0.0
      %793 = vmatpush.msra.mxu0 0.0
      %794 = vmatpush.msra.mxu0 0.0
      %795 = vmatpush.msra.mxu0 0.0
      %796 = vmatpush.msra.mxu0 %v771
      %797 = vmatmul.f32.gmra.mxu0 %v779
      %v798 = vpop.f32.mrf.mxu0
      %v799 = vadd.f32 0.0, %v798
      %800 = vdwg.mxu0
      %v802 = vsel %vm643, %v776, 0
      %804 = vmatpush.msra.mxu0 0.0
      %805 = vmatpush.msra.mxu0 0.0
      %806 = vmatpush.msra.mxu0 0.0
      %807 = vmatpush.msra.mxu0 0.0
      %808 = vmatpush.msra.mxu0 0.0
      %809 = vmatpush.msra.mxu0 0.0
      %810 = vmatpush.msra.mxu0 0.0
      %811 = vmatpush.msra.mxu0 0.0
      %812 = vmatpush.msra.mxu0 0.0
      %813 = vmatpush.msra.mxu0 0.0
      %814 = vmatpush.msra.mxu0 0.0
      %815 = vmatpush.msra.mxu0 0.0
      %816 = vmatpush.msra.mxu0 0.0
      %817 = vmatpush.msra.mxu0 0.0
      %818 = vmatpush.msra.mxu0 0.0
      %819 = vmatpush.msra.mxu0 %v636
      %820 = vmatmul.f32.gmra.mxu0 %v802
      %v821 = vpop.f32.mrf.mxu0
      %v822 = vadd.f32 %v799, %v821
      %823 = vdwg.mxu0
      %825 = vset.pattern.permute.xlu0 0
      %826 = vperm.xlu0 %825, %v775
      %v827 = vpop.permute.xlu0 %826
      %v829 = vadd.f32 %v822, %v827
      %vm830 = vcmp.gt.f32.partialorder %v829, 0.0
      %v831 = vmul.f32 %v829, 0.01
      %v832 = vsel %vm830, %v829, %v831
      %833 = vmatpush.msra.mxu0 0.0
      %834 = vmatpush.msra.mxu0 0.0
      %835 = vmatpush.msra.mxu0 0.0
      %836 = vmatpush.msra.mxu0 0.0
      %837 = vmatpush.msra.mxu0 0.0
      %838 = vmatpush.msra.mxu0 0.0
      %839 = vmatpush.msra.mxu0 0.0
      %840 = vmatpush.msra.mxu0 0.0
      %841 = vmatpush.msra.mxu0 0.0
      %842 = vmatpush.msra.mxu0 0.0
      %843 = vmatpush.msra.mxu0 0.0
      %844 = vmatpush.msra.mxu0 0.0
      %845 = vmatpush.msra.mxu0 0.0
      %846 = vmatpush.msra.mxu0 0.0
      %847 = vmatpush.msra.mxu0 0.0
      %848 = vmatpush.msra.mxu0 %v774
      %849 = vmatmul.f32.gmra.mxu0 %v779
      %v850 = vpop.f32.mrf.mxu0
      %v851 = vadd.f32 0.0, %v850
      %852 = vdwg.mxu0
      %853 = vmatpush.msra.mxu0 0.0
      %854 = vmatpush.msra.mxu0 0.0
      %855 = vmatpush.msra.mxu0 0.0
      %856 = vmatpush.msra.mxu0 0.0
      %857 = vmatpush.msra.mxu0 0.0
      %858 = vmatpush.msra.mxu0 0.0
      %859 = vmatpush.msra.mxu0 0.0
      %860 = vmatpush.msra.mxu0 0.0
      %861 = vmatpush.msra.mxu0 0.0
      %862 = vmatpush.msra.mxu0 0.0
      %863 = vmatpush.msra.mxu0 0.0
      %864 = vmatpush.msra.mxu0 0.0
      %865 = vmatpush.msra.mxu0 0.0
      %866 = vmatpush.msra.mxu0 0.0
      %867 = vmatpush.msra.mxu0 0.0
      %868 = vmatpush.msra.mxu0 %v639
      %869 = vmatmul.f32.gmra.mxu0 %v802
      %v870 = vpop.f32.mrf.mxu0
      %v871 = vadd.f32 %v851, %v870
      %872 = vdwg.mxu0
      %v873 = vadd.f32 %v871, %v827
      %vm874 = vcmp.gt.f32.partialorder %v873, 0.0
      %v875 = vmul.f32 %v873, 0.01
      %v876 = vsel %vm874, %v873, %v875
      %877 = vst [vmem:[%s507] sm:$0xff] %v832
      %878 = vst [vmem:[%s507 + $0x8] sm:$0xff] %v876
      %879 = vadd.xlane.f32.xlu0 %v832
      %v880 = vpop.xlane.xlu0 %879
      %881 = vadd.xlane.f32.xlu0 %v876
      %v882 = vpop.xlane.xlu0 %881
      %v883 = vadd.f32 %v880, %v882
      %vm884 = vcmask 7168
      %885 = vst.msk [vmem:[%s511] sm:$0xff] %vm884, %v883
      %v886 = vmul.f32 %v832, %v832
      %887 = vadd.xlane.f32.xlu0 %v886
      %v888 = vpop.xlane.xlu0 %887
      %v889 = vmul.f32 %v876, %v876
      %890 = vadd.xlane.f32.xlu0 %v889
      %v891 = vpop.xlane.xlu0 %890
      %v892 = vadd.f32 %v888, %v891
      %893 = vst.msk [vmem:[%s515] sm:$0xff] %vm884, %v892
      %p894 = scmp.lt.s32.totalorder %s27, 1
      %s895 = scalar_select %p894, %s27, 1
      %s896 = smul.addr %s895, 2
      %s897 = smul.addr %s896, 8
      %s898 = scalar_lea.vmem %s13, %s897
      %p899 = scmp.lt.s32.totalorder %s27, 1
      %s900 = scalar_select %p899, %s27, 1
      %s901 = smul.addr %s900, 8
      %s902 = scalar_lea.vmem %s14, %s901
      %p903 = scmp.lt.s32.totalorder %s27, 1
      %s904 = scalar_select %p903, %s27, 1
      %s905 = smul.addr %s904, 8
      %s906 = scalar_lea.vmem %s15, %s905
      // Predicated region
      $region73: #{ublock_forward.2} parent=71 // pred_check
        %p907 = pneg %p323
      $region74: #{ublock_forward.2} parent=71 // pred_check_branch
        %909 = sbr.rel (%p907) target = $region76
      $region75: #{ublock_forward.2} parent=71 // pred_region
        _
      $region76: #{ublock_forward.2} parent=71 // pred_fallthru
        _
      // Predicated region
      $region77: #{ublock_forward.2} parent=71 // pred_check
        %p910 = pneg %p349
      $region78: #{ublock_forward.2} parent=71 // pred_check_branch
        %912 = sbr.rel (%p910) target = $region80
      $region79: #{ublock_forward.2} parent=71 // pred_region
        _
      $region80: #{ublock_forward.2} parent=71 // pred_fallthru
        _
      // Predicated region
      $region81: #{ublock_forward.2} parent=71 // pred_check
        %p913 = pneg %p375
      $region82: #{ublock_forward.2} parent=71 // pred_check_branch
        %915 = sbr.rel (%p913) target = $region84
      $region83: #{ublock_forward.2} parent=71 // pred_region
        _
      $region84: #{ublock_forward.2} parent=71 // pred_fallthru
        _
    $region72: #{ublock_forward.2} parent=5 // pred_fallthru
      _
    %p916 = scmp.le.s32.totalorder 2, %s22
    // Predicated region
    $region85: #{ublock_forward.2} parent=5 // pred_check
      %p917 = pneg %p916
    $region86: #{ublock_forward.2} parent=5 // pred_check_branch
      %919 = sbr.rel (%p917) target = $region88
    $region87: #{ublock_forward.2} parent=5 // pred_region
      %s920 = ssub.s32 %s22, 2
      // Predicated region
      $region89: #{ublock_forward.2} parent=87 // pred_check
        %p921 = pneg %p329
      $region90: #{ublock_forward.2} parent=87 // pred_check_branch
        %923 = sbr.rel (%p921) target = $region92
      $region91: #{ublock_forward.2} parent=87 // pred_region
        %p924 = scmp.lt.s32.totalorder %s28, 1
        %s925 = scalar_select %p924, %s28, 1
        %s926 = smul.addr %s925, 2
        %s927 = smul.addr %s926, 8
        %s928 = scalar_lea.vmem %s13, %s927
      $region92: #{ublock_forward.2} parent=87 // pred_fallthru
        _
      // Predicated region
      $region93: #{ublock_forward.2} parent=87 // pred_check
        %p929 = pneg %p355
      $region94: #{ublock_forward.2} parent=87 // pred_check_branch
        %931 = sbr.rel (%p929) target = $region96
      $region95: #{ublock_forward.2} parent=87 // pred_region
        %p932 = scmp.lt.s32.totalorder %s28, 1
        %s933 = scalar_select %p932, %s28, 1
        %s934 = smul.addr %s933, 8
        %s935 = scalar_lea.vmem %s14, %s934
      $region96: #{ublock_forward.2} parent=87 // pred_fallthru
        _
      // Predicated region
      $region97: #{ublock_forward.2} parent=87 // pred_check
        %p936 = pneg %p381
      $region98: #{ublock_forward.2} parent=87 // pred_check_branch
        %938 = sbr.rel (%p936) target = $region100
      $region99: #{ublock_forward.2} parent=87 // pred_region
        %p939 = scmp.lt.s32.totalorder %s28, 1
        %s940 = scalar_select %p939, %s28, 1
        %s941 = smul.addr %s940, 8
        %s942 = scalar_lea.vmem %s15, %s941
      $region100: #{ublock_forward.2} parent=87 // pred_fallthru
        _
    $region88: #{ublock_forward.2} parent=5 // pred_fallthru
      _
  $region6: #{ublock_forward.2} parent=0 // loop_footer
    %s26 = sadd.s32 1, %s22
  $region7: #{ublock_forward.2} parent=0 // loop_footer_branch
    %21 = sbr.rel target = $region3
  $region8: #{ublock_forward.2} parent=0 // loop_exit
    _

</llo_original>
